<compile_context>
chip_gen: v5e
topology: v5e:2x2
jax: 0.10.0
libtpu: 0.0.40
codegen_flags: <defaults>
</compile_context>

<pallas_src>
import jax
import jax.numpy as jnp
from jax import lax
from jax.experimental import pallas as pl
from jax.experimental.pallas import tpu as pltpu


def _sigmoid(x):
    return 1.0 / (1.0 + jnp.exp(-x))


def _softplus(x):
    # matches torch.nn.functional.softplus (beta=1, threshold=20)
    return jnp.where(x > 20.0, x, jnp.log1p(jnp.exp(jnp.minimum(x, 20.0))))


def lstm_weibull_kernel(len_ref, xg_ref, whh_ref, b_ref, wab_ref, bab_ref,
                        alpha_ref, beta_ref):
    T, Bp, _ = xg_ref.shape
    H = whh_ref.shape[0]

    # Weights / constants resident for the whole recurrence.
    whh = whh_ref[...]          # (H, 4H)   fused recurrent weight (gate order i,f,g,o)
    bias = b_ref[...]           # (1, 4H)   b_ih + b_hh, fused
    wab = wab_ref[...]          # (H, 2)    [alpha | beta] head weights
    bab = bab_ref[...]          # (1, 2)
    lengths = len_ref[...]      # (Bp, 1)   int32

    def step(t, carry):
        h_prev, c_prev = carry                                        # (Bp, H) each, f32

        # Single fused recurrent matmul -> lane-dense (Bp, 4H=128) gate pre-activations.
        gates = (jnp.dot(h_prev, whh, preferred_element_type=jnp.float32)
                 + xg_ref[t] + bias)                                  # (Bp, 4H)

        i_g = _sigmoid(gates[:, 0:H])
        f_g = _sigmoid(gates[:, H:2 * H])
        g_g = jnp.tanh(gates[:, 2 * H:3 * H])
        o_g = _sigmoid(gates[:, 3 * H:4 * H])

        c_new = f_g * c_prev + i_g * g_g
        h_new = o_g * jnp.tanh(c_new)

        # pack/pad semantics: state frozen past a sequence's length; padded outputs
        # come from an exactly-zero hidden state (matches Linear applied to zero-padded rnn_out).
        valid = lengths > t                                           # (Bp, 1) bool
        h = jnp.where(valid, h_new, h_prev)
        c = jnp.where(valid, c_new, c_prev)
        h_out = jnp.where(valid, h_new, 0.0)

        # Fused Weibull heads: one (Bp, H)@(H, 2) dot, then exp / softplus.
        ab = jnp.dot(h_out, wab, preferred_element_type=jnp.float32) + bab   # (Bp, 2)
        alpha_ref[t] = jnp.exp(ab[:, 0:1])
        beta_ref[t] = _softplus(ab[:, 1:2])
        return h, c

    h0 = jnp.zeros((Bp, H), jnp.float32)
    c0 = jnp.zeros((Bp, H), jnp.float32)
    unroll = T if T <= 8 else 4          # give the scheduler visibility across steps
    lax.fori_loop(0, T, step, (h0, c0), unroll=unroll)


def providence_lstm_forward(x, x_lengths, params):
    """x: (T, B, D) float32, x_lengths: (B,) int (max(x_lengths) must equal T)."""
    T, B, D = x.shape
    H = params["whh"].shape[0]
    hp = lax.Precision.HIGHEST

    # Hoisted, non-recurrent input projection: one big well-shaped matmul.
    xg = jnp.dot(x.reshape(T * B, D), params["wih"], precision=hp)
    xg = xg.reshape(T, B, 4 * H).astype(jnp.float32)

    # Pad batch to a multiple of 8 sublanes; padded rows get length 0 (always masked).
    Bp = max(8, ((B + 7) // 8) * 8)
    pad = Bp - B
    if pad:
        xg = jnp.pad(xg, ((0, 0), (0, pad), (0, 0)))
    lengths = jnp.pad(x_lengths.astype(jnp.int32), (0, pad)).reshape(Bp, 1)

    grid_spec = pltpu.PrefetchScalarGridSpec(
        num_scalar_prefetch=0,
        grid=(1,),                                            # time loop is inside the kernel
        in_specs=[
            pl.BlockSpec((Bp, 1), lambda i: (0, 0)),          # lengths
            pl.BlockSpec((T, Bp, 4 * H), lambda i: (0, 0, 0)),# precomputed X @ W_ih
            pl.BlockSpec((H, 4 * H), lambda i: (0, 0)),       # fused W_hh^T
            pl.BlockSpec((1, 4 * H), lambda i: (0, 0)),       # fused bias
            pl.BlockSpec((H, 2), lambda i: (0, 0)),           # fused [alpha|beta] head weight
            pl.BlockSpec((1, 2), lambda i: (0, 0)),           # fused head bias
        ],
        out_specs=[
            pl.BlockSpec((T, Bp, 1), lambda i: (0, 0, 0)),    # alpha (single writeback)
            pl.BlockSpec((T, Bp, 1), lambda i: (0, 0, 0)),    # beta  (single writeback)
        ],
    )

    alpha, beta = pl.pallas_call(
        lstm_weibull_kernel,
        out_shape=(jax.ShapeDtypeStruct((T, Bp, 1), jnp.float32),
                   jax.ShapeDtypeStruct((T, Bp, 1), jnp.float32)),
        grid_spec=grid_spec,
        compiler_params=pltpu.CompilerParams(
            dimension_semantics=("arbitrary",),
            vmem_limit_bytes=64 * 1024 * 1024),
    )(lengths, xg, params["whh"], params["b"], params["wab"], params["bab"])

    return alpha[:, :B, :], beta[:, :B, :]


def reference_forward(x, x_lengths, p):
    """Pure-JAX reference with identical math (for correctness check)."""
    T, B, D = x.shape
    H = p["whh"].shape[0]
    hp = lax.Precision.HIGHEST
    lengths = x_lengths.astype(jnp.int32).reshape(B, 1)
    h = jnp.zeros((B, H), jnp.float32)
    c = jnp.zeros((B, H), jnp.float32)
    xg = jnp.dot(x.reshape(T * B, D), p["wih"], precision=hp).reshape(T, B, 4 * H)
    alphas, betas = [], []
    for t in range(T):
        gates = jnp.dot(h, p["whh"], precision=hp) + xg[t] + p["b"]
        i_g, f_g = _sigmoid(gates[:, 0:H]), _sigmoid(gates[:, H:2 * H])
        g_g, o_g = jnp.tanh(gates[:, 2 * H:3 * H]), _sigmoid(gates[:, 3 * H:4 * H])
        c_new = f_g * c + i_g * g_g
        h_new = o_g * jnp.tanh(c_new)
        valid = lengths > t
        h = jnp.where(valid, h_new, h)
        c = jnp.where(valid, c_new, c)
        h_out = jnp.where(valid, h_new, 0.0)
        ab = jnp.dot(h_out, p["wab"], precision=hp) + p["bab"]
        alphas.append(jnp.exp(ab[:, 0:1]))
        betas.append(_softplus(ab[:, 1:2]))
    return jnp.stack(alphas), jnp.stack(betas)


def init_params(key, input_size, hidden_size):
    D, H = input_size, hidden_size
    k = 1.0 / jnp.sqrt(jnp.float32(H))
    ks = jax.random.split(key, 8)
    u = lambda kk, shape: jax.random.uniform(kk, shape, jnp.float32, -k, k)
    # PyTorch nn.LSTM layout: weight_ih_l0 (4H, D), weight_hh_l0 (4H, H), gate order i,f,g,o.
    w_ih = u(ks[0], (4 * H, D))
    w_hh = u(ks[1], (4 * H, H))
    b_ih = u(ks[2], (4 * H,))
    b_hh = u(ks[3], (4 * H,))
    # WeibullActivation: two nn.Linear(H, 1)
    w_a = u(ks[4], (1, H))
    b_a = u(ks[5], (1,))
    w_b = u(ks[6], (1, H))
    b_b = u(ks[7], (1,))
    return {
        "wih": w_ih.T,                                        # (D, 4H)  fused gates
        "whh": w_hh.T,                                        # (H, 4H)  fused gates
        "b": (b_ih + b_hh).reshape(1, 4 * H),                 # (1, 4H)
        "wab": jnp.concatenate([w_a.T, w_b.T], axis=1),       # (H, 2)   [alpha | beta]
        "bab": jnp.concatenate([b_a, b_b]).reshape(1, 2),     # (1, 2)
    }


if __name__ == "__main__":
    T, B, D, H = 8, 2, 8, 32   # seq=8, batch=2, input_size=8, hidden_size=32
    key = jax.random.PRNGKey(0)
    k_x, k_p = jax.random.split(key)

    x = jax.random.normal(k_x, (T, B, D), jnp.float32)
    # pack_padded_sequence requires descending lengths; max length == T so the padded
    # output has T rows (as pad_packed_sequence would produce here).
    x_lengths = jnp.array([8, 5], dtype=jnp.int32)
    params = init_params(k_p, D, H)

    alpha, beta = providence_lstm_forward(x, x_lengths, params)
    jax.block_until_ready((alpha, beta))

    a_ref, b_ref = reference_forward(x, x_lengths, params)
    assert alpha.shape == (T, B, 1) and beta.shape == (T, B, 1)
    assert jnp.allclose(alpha, a_ref, rtol=1e-4, atol=1e-5), "alpha mismatch"
    assert jnp.allclose(beta, b_ref, rtol=1e-4, atol=1e-5), "beta mismatch"

    print("KERNEL_OK")
</pallas_src>

<mosaic_0001>
module attributes {stable_mosaic.version = 11 : i64} {
  func.func @lstm_weibull_kernel(%arg0: i32, %arg1: memref<8x1xi32, #tpu.memory_space<vmem>>, %arg2: memref<8x8x128xf32, #tpu.memory_space<vmem>>, %arg3: memref<32x128xf32, #tpu.memory_space<vmem>>, %arg4: memref<1x128xf32, #tpu.memory_space<vmem>>, %arg5: memref<32x2xf32, #tpu.memory_space<vmem>>, %arg6: memref<1x2xf32, #tpu.memory_space<vmem>>, %arg7: memref<8x8x1xf32, #tpu.memory_space<vmem>>, %arg8: memref<8x8x1xf32, #tpu.memory_space<vmem>>) attributes {dimension_semantics = [#tpu.dimension_semantics<arbitrary>], iteration_bounds = array<i64: 1>, scalar_prefetch = 0 : i64, scratch_operands = 0 : i64, tpu.core_type = #tpu.core_type<tc>, window_params = [{pipeline_mode = #tpu.pipeline_mode<synchronous>, transform_indices = @transform_0, window_bounds = array<i64: 8, 1>}, {pipeline_mode = #tpu.pipeline_mode<synchronous>, transform_indices = @transform_1, window_bounds = array<i64: 8, 8, 128>}, {pipeline_mode = #tpu.pipeline_mode<synchronous>, transform_indices = @transform_2, window_bounds = array<i64: 32, 128>}, {pipeline_mode = #tpu.pipeline_mode<synchronous>, transform_indices = @transform_3, window_bounds = array<i64: 1, 128>}, {pipeline_mode = #tpu.pipeline_mode<synchronous>, transform_indices = @transform_4, window_bounds = array<i64: 32, 2>}, {pipeline_mode = #tpu.pipeline_mode<synchronous>, transform_indices = @transform_5, window_bounds = array<i64: 1, 2>}, {pipeline_mode = #tpu.pipeline_mode<synchronous>, transform_indices = @transform_6, window_bounds = array<i64: 8, 8, 1>}, {pipeline_mode = #tpu.pipeline_mode<synchronous>, transform_indices = @transform_7, window_bounds = array<i64: 8, 8, 1>}]} {
    %c0 = arith.constant 0 : index
    %c0_0 = arith.constant 0 : index
    %0 = vector.load %arg3[%c0, %c0_0] : memref<32x128xf32, #tpu.memory_space<vmem>>, vector<32x128xf32>
    %c0_1 = arith.constant 0 : index
    %c0_2 = arith.constant 0 : index
    %1 = vector.load %arg4[%c0_1, %c0_2] : memref<1x128xf32, #tpu.memory_space<vmem>>, vector<1x128xf32>
    %c0_3 = arith.constant 0 : index
    %c0_4 = arith.constant 0 : index
    %2 = vector.load %arg5[%c0_3, %c0_4] : memref<32x2xf32, #tpu.memory_space<vmem>>, vector<32x2xf32>
    %c0_5 = arith.constant 0 : index
    %c0_6 = arith.constant 0 : index
    %3 = vector.load %arg6[%c0_5, %c0_6] : memref<1x2xf32, #tpu.memory_space<vmem>>, vector<1x2xf32>
    %c0_7 = arith.constant 0 : index
    %c0_8 = arith.constant 0 : index
    %4 = vector.load %arg1[%c0_7, %c0_8] : memref<8x1xi32, #tpu.memory_space<vmem>>, vector<8x1xi32>
    %cst = arith.constant 0.000000e+00 : f32
    %5 = vector.broadcast %cst : f32 to vector<8x32xf32>
    %cst_9 = arith.constant 0.000000e+00 : f32
    %6 = vector.broadcast %cst_9 : f32 to vector<8x32xf32>
    %c0_i32 = arith.constant 0 : i32
    %cst_10 = arith.constant dense<0.000000e+00> : vector<8x128xf32>
    %7 = tpu.matmul %5, %0, %cst_10 {dimension_numbers = #tpu.dot_dimension_numbers<[1], [0], [0], [1], [0, 0, 1, 1], [], []>} : vector<8x32xf32>, vector<32x128xf32>, vector<8x128xf32> -> vector<8x128xf32>
    %8 = arith.index_cast %c0_i32 : i32 to index
    %c0_11 = arith.constant 0 : index
    %c0_12 = arith.constant 0 : index
    %9 = vector.load %arg2[%8, %c0_11, %c0_12] : memref<8x8x128xf32, #tpu.memory_space<vmem>>, vector<1x8x128xf32>
    %10 = vector.shape_cast %9 : vector<1x8x128xf32> to vector<8x128xf32>
    %11 = arith.addf %7, %10 : vector<8x128xf32>
    %12 = vector.broadcast %1 : vector<1x128xf32> to vector<8x128xf32>
    %13 = arith.addf %11, %12 : vector<8x128xf32>
    %14 = vector.extract_strided_slice %13 {offsets = [0, 0], sizes = [8, 32], strides = [1, 1]} : vector<8x128xf32> to vector<8x32xf32>
    %cst_13 = arith.constant 0.000000e+00 : f32
    %15 = vector.broadcast %cst_13 : f32 to vector<8x32xf32>
    %16 = arith.subf %15, %14 : vector<8x32xf32>
    %17 = math.exp %16 : vector<8x32xf32>
    %cst_14 = arith.constant 1.000000e+00 : f32
    %18 = vector.broadcast %cst_14 : f32 to vector<8x32xf32>
    %19 = arith.addf %18, %17 : vector<8x32xf32>
    %cst_15 = arith.constant 1.000000e+00 : f32
    %20 = vector.broadcast %cst_15 : f32 to vector<8x32xf32>
    %21 = arith.divf %20, %19 : vector<8x32xf32>
    %22 = vector.extract_strided_slice %13 {offsets = [0, 32], sizes = [8, 32], strides = [1, 1]} : vector<8x128xf32> to vector<8x32xf32>
    %cst_16 = arith.constant 0.000000e+00 : f32
    %23 = vector.broadcast %cst_16 : f32 to vector<8x32xf32>
    %24 = arith.subf %23, %22 : vector<8x32xf32>
    %25 = math.exp %24 : vector<8x32xf32>
    %cst_17 = arith.constant 1.000000e+00 : f32
    %26 = vector.broadcast %cst_17 : f32 to vector<8x32xf32>
    %27 = arith.addf %26, %25 : vector<8x32xf32>
    %cst_18 = arith.constant 1.000000e+00 : f32
    %28 = vector.broadcast %cst_18 : f32 to vector<8x32xf32>
    %29 = arith.divf %28, %27 : vector<8x32xf32>
    %30 = vector.extract_strided_slice %13 {offsets = [0, 64], sizes = [8, 32], strides = [1, 1]} : vector<8x128xf32> to vector<8x32xf32>
    %31 = math.tanh %30 : vector<8x32xf32>
    %32 = vector.extract_strided_slice %13 {offsets = [0, 96], sizes = [8, 32], strides = [1, 1]} : vector<8x128xf32> to vector<8x32xf32>
    %cst_19 = arith.constant 0.000000e+00 : f32
    %33 = vector.broadcast %cst_19 : f32 to vector<8x32xf32>
    %34 = arith.subf %33, %32 : vector<8x32xf32>
    %35 = math.exp %34 : vector<8x32xf32>
    %cst_20 = arith.constant 1.000000e+00 : f32
    %36 = vector.broadcast %cst_20 : f32 to vector<8x32xf32>
    %37 = arith.addf %36, %35 : vector<8x32xf32>
    %cst_21 = arith.constant 1.000000e+00 : f32
    %38 = vector.broadcast %cst_21 : f32 to vector<8x32xf32>
    %39 = arith.divf %38, %37 : vector<8x32xf32>
    %40 = arith.mulf %29, %6 : vector<8x32xf32>
    %41 = arith.mulf %21, %31 : vector<8x32xf32>
    %42 = arith.addf %40, %41 : vector<8x32xf32>
    %43 = math.tanh %42 : vector<8x32xf32>
    %44 = arith.mulf %39, %43 : vector<8x32xf32>
    %45 = vector.broadcast %c0_i32 : i32 to vector<8x1xi32>
    %46 = arith.cmpi sgt, %4, %45 : vector<8x1xi32>
    %47 = vector.shape_cast %46 : vector<8x1xi1> to vector<8x1xi1>
    %48 = vector.broadcast %47 : vector<8x1xi1> to vector<8x32xi1>
    %49 = arith.select %48, %44, %5 : vector<8x32xi1>, vector<8x32xf32>
    %50 = vector.shape_cast %46 : vector<8x1xi1> to vector<8x1xi1>
    %51 = vector.broadcast %50 : vector<8x1xi1> to vector<8x32xi1>
    %52 = arith.select %51, %42, %6 : vector<8x32xi1>, vector<8x32xf32>
    %cst_22 = arith.constant 0.000000e+00 : f32
    %53 = vector.shape_cast %46 : vector<8x1xi1> to vector<8x1xi1>
    %54 = vector.broadcast %53 : vector<8x1xi1> to vector<8x32xi1>
    %55 = vector.broadcast %cst_22 : f32 to vector<8x32xf32>
    %56 = arith.select %54, %44, %55 : vector<8x32xi1>, vector<8x32xf32>
    %cst_23 = arith.constant dense<0.000000e+00> : vector<8x2xf32>
    %57 = tpu.matmul %56, %2, %cst_23 {dimension_numbers = #tpu.dot_dimension_numbers<[1], [0], [0], [1], [0, 0, 1, 1], [], []>} : vector<8x32xf32>, vector<32x2xf32>, vector<8x2xf32> -> vector<8x2xf32>
    %58 = vector.broadcast %3 : vector<1x2xf32> to vector<8x2xf32>
    %59 = arith.addf %57, %58 : vector<8x2xf32>
    %60 = vector.extract_strided_slice %59 {offsets = [0, 0], sizes = [8, 1], strides = [1, 1]} : vector<8x2xf32> to vector<8x1xf32>
    %61 = math.exp %60 : vector<8x1xf32>
    %62 = arith.index_cast %c0_i32 : i32 to index
    %c0_24 = arith.constant 0 : index
    %c0_25 = arith.constant 0 : index
    %63 = vector.load %arg7[%62, %c0_24, %c0_25] : memref<8x8x1xf32, #tpu.memory_space<vmem>>, vector<1x8x1xf32>
    %64 = vector.shape_cast %63 : vector<1x8x1xf32> to vector<8x1xf32>
    %65 = vector.shape_cast %61 : vector<8x1xf32> to vector<1x8x1xf32>
    tpu.vector_store %arg7[%62, %c0_24, %c0_25], %65 {strides = array<i32>} : memref<8x8x1xf32, #tpu.memory_space<vmem>>, vector<1x8x1xf32>,
    %66 = vector.extract_strided_slice %59 {offsets = [0, 1], sizes = [8, 1], strides = [1, 1]} : vector<8x2xf32> to vector<8x1xf32>
    %cst_26 = arith.constant 2.000000e+01 : f32
    %67 = vector.broadcast %cst_26 : f32 to vector<8x1xf32>
    %68 = arith.cmpf ogt, %66, %67 : vector<8x1xf32>
    %cst_27 = arith.constant 2.000000e+01 : f32
    %69 = vector.broadcast %cst_27 : f32 to vector<8x1xf32>
    %70 = arith.minimumf %66, %69 : vector<8x1xf32>
    %71 = math.exp %70 : vector<8x1xf32>
    %72 = math.log1p %71 : vector<8x1xf32>
    %73 = arith.select %68, %66, %72 : vector<8x1xi1>, vector<8x1xf32>
    %74 = arith.index_cast %c0_i32 : i32 to index
    %c0_28 = arith.constant 0 : index
    %c0_29 = arith.constant 0 : index
    %75 = vector.load %arg8[%74, %c0_28, %c0_29] : memref<8x8x1xf32, #tpu.memory_space<vmem>>, vector<1x8x1xf32>
    %76 = vector.shape_cast %75 : vector<1x8x1xf32> to vector<8x1xf32>
    %77 = vector.shape_cast %73 : vector<8x1xf32> to vector<1x8x1xf32>
    tpu.vector_store %arg8[%74, %c0_28, %c0_29], %77 {strides = array<i32>} : memref<8x8x1xf32, #tpu.memory_space<vmem>>, vector<1x8x1xf32>,
    %c1_i32 = arith.constant 1 : i32
    %cst_30 = arith.constant dense<0.000000e+00> : vector<8x128xf32>
    %78 = tpu.matmul %49, %0, %cst_30 {dimension_numbers = #tpu.dot_dimension_numbers<[1], [0], [0], [1], [0, 0, 1, 1], [], []>} : vector<8x32xf32>, vector<32x128xf32>, vector<8x128xf32> -> vector<8x128xf32>
    %79 = arith.index_cast %c1_i32 : i32 to index
    %c0_31 = arith.constant 0 : index
    %c0_32 = arith.constant 0 : index
    %80 = vector.load %arg2[%79, %c0_31, %c0_32] : memref<8x8x128xf32, #tpu.memory_space<vmem>>, vector<1x8x128xf32>
    %81 = vector.shape_cast %80 : vector<1x8x128xf32> to vector<8x128xf32>
    %82 = arith.addf %78, %81 : vector<8x128xf32>
    %83 = vector.broadcast %1 : vector<1x128xf32> to vector<8x128xf32>
    %84 = arith.addf %82, %83 : vector<8x128xf32>
    %85 = vector.extract_strided_slice %84 {offsets = [0, 0], sizes = [8, 32], strides = [1, 1]} : vector<8x128xf32> to vector<8x32xf32>
    %cst_33 = arith.constant 0.000000e+00 : f32
    %86 = vector.broadcast %cst_33 : f32 to vector<8x32xf32>
    %87 = arith.subf %86, %85 : vector<8x32xf32>
    %88 = math.exp %87 : vector<8x32xf32>
    %cst_34 = arith.constant 1.000000e+00 : f32
    %89 = vector.broadcast %cst_34 : f32 to vector<8x32xf32>
    %90 = arith.addf %89, %88 : vector<8x32xf32>
    %cst_35 = arith.constant 1.000000e+00 : f32
    %91 = vector.broadcast %cst_35 : f32 to vector<8x32xf32>
    %92 = arith.divf %91, %90 : vector<8x32xf32>
    %93 = vector.extract_strided_slice %84 {offsets = [0, 32], sizes = [8, 32], strides = [1, 1]} : vector<8x128xf32> to vector<8x32xf32>
    %cst_36 = arith.constant 0.000000e+00 : f32
    %94 = vector.broadcast %cst_36 : f32 to vector<8x32xf32>
    %95 = arith.subf %94, %93 : vector<8x32xf32>
    %96 = math.exp %95 : vector<8x32xf32>
    %cst_37 = arith.constant 1.000000e+00 : f32
    %97 = vector.broadcast %cst_37 : f32 to vector<8x32xf32>
    %98 = arith.addf %97, %96 : vector<8x32xf32>
    %cst_38 = arith.constant 1.000000e+00 : f32
    %99 = vector.broadcast %cst_38 : f32 to vector<8x32xf32>
    %100 = arith.divf %99, %98 : vector<8x32xf32>
    %101 = vector.extract_strided_slice %84 {offsets = [0, 64], sizes = [8, 32], strides = [1, 1]} : vector<8x128xf32> to vector<8x32xf32>
    %102 = math.tanh %101 : vector<8x32xf32>
    %103 = vector.extract_strided_slice %84 {offsets = [0, 96], sizes = [8, 32], strides = [1, 1]} : vector<8x128xf32> to vector<8x32xf32>
    %cst_39 = arith.constant 0.000000e+00 : f32
    %104 = vector.broadcast %cst_39 : f32 to vector<8x32xf32>
    %105 = arith.subf %104, %103 : vector<8x32xf32>
    %106 = math.exp %105 : vector<8x32xf32>
    %cst_40 = arith.constant 1.000000e+00 : f32
    %107 = vector.broadcast %cst_40 : f32 to vector<8x32xf32>
    %108 = arith.addf %107, %106 : vector<8x32xf32>
    %cst_41 = arith.constant 1.000000e+00 : f32
    %109 = vector.broadcast %cst_41 : f32 to vector<8x32xf32>
    %110 = arith.divf %109, %108 : vector<8x32xf32>
    %111 = arith.mulf %100, %52 : vector<8x32xf32>
    %112 = arith.mulf %92, %102 : vector<8x32xf32>
    %113 = arith.addf %111, %112 : vector<8x32xf32>
    %114 = math.tanh %113 : vector<8x32xf32>
    %115 = arith.mulf %110, %114 : vector<8x32xf32>
    %116 = vector.broadcast %c1_i32 : i32 to vector<8x1xi32>
    %117 = arith.cmpi sgt, %4, %116 : vector<8x1xi32>
    %118 = vector.shape_cast %117 : vector<8x1xi1> to vector<8x1xi1>
    %119 = vector.broadcast %118 : vector<8x1xi1> to vector<8x32xi1>
    %120 = arith.select %119, %115, %49 : vector<8x32xi1>, vector<8x32xf32>
    %121 = vector.shape_cast %117 : vector<8x1xi1> to vector<8x1xi1>
    %122 = vector.broadcast %121 : vector<8x1xi1> to vector<8x32xi1>
    %123 = arith.select %122, %113, %52 : vector<8x32xi1>, vector<8x32xf32>
    %cst_42 = arith.constant 0.000000e+00 : f32
    %124 = vector.shape_cast %117 : vector<8x1xi1> to vector<8x1xi1>
    %125 = vector.broadcast %124 : vector<8x1xi1> to vector<8x32xi1>
    %126 = vector.broadcast %cst_42 : f32 to vector<8x32xf32>
    %127 = arith.select %125, %115, %126 : vector<8x32xi1>, vector<8x32xf32>
    %cst_43 = arith.constant dense<0.000000e+00> : vector<8x2xf32>
    %128 = tpu.matmul %127, %2, %cst_43 {dimension_numbers = #tpu.dot_dimension_numbers<[1], [0], [0], [1], [0, 0, 1, 1], [], []>} : vector<8x32xf32>, vector<32x2xf32>, vector<8x2xf32> -> vector<8x2xf32>
    %129 = vector.broadcast %3 : vector<1x2xf32> to vector<8x2xf32>
    %130 = arith.addf %128, %129 : vector<8x2xf32>
    %131 = vector.extract_strided_slice %130 {offsets = [0, 0], sizes = [8, 1], strides = [1, 1]} : vector<8x2xf32> to vector<8x1xf32>
    %132 = math.exp %131 : vector<8x1xf32>
    %133 = arith.index_cast %c1_i32 : i32 to index
    %c0_44 = arith.constant 0 : index
    %c0_45 = arith.constant 0 : index
    %134 = vector.load %arg7[%133, %c0_44, %c0_45] : memref<8x8x1xf32, #tpu.memory_space<vmem>>, vector<1x8x1xf32>
    %135 = vector.shape_cast %134 : vector<1x8x1xf32> to vector<8x1xf32>
    %136 = vector.shape_cast %132 : vector<8x1xf32> to vector<1x8x1xf32>
    tpu.vector_store %arg7[%133, %c0_44, %c0_45], %136 {strides = array<i32>} : memref<8x8x1xf32, #tpu.memory_space<vmem>>, vector<1x8x1xf32>,
    %137 = vector.extract_strided_slice %130 {offsets = [0, 1], sizes = [8, 1], strides = [1, 1]} : vector<8x2xf32> to vector<8x1xf32>
    %cst_46 = arith.constant 2.000000e+01 : f32
    %138 = vector.broadcast %cst_46 : f32 to vector<8x1xf32>
    %139 = arith.cmpf ogt, %137, %138 : vector<8x1xf32>
    %cst_47 = arith.constant 2.000000e+01 : f32
    %140 = vector.broadcast %cst_47 : f32 to vector<8x1xf32>
    %141 = arith.minimumf %137, %140 : vector<8x1xf32>
    %142 = math.exp %141 : vector<8x1xf32>
    %143 = math.log1p %142 : vector<8x1xf32>
    %144 = arith.select %139, %137, %143 : vector<8x1xi1>, vector<8x1xf32>
    %145 = arith.index_cast %c1_i32 : i32 to index
    %c0_48 = arith.constant 0 : index
    %c0_49 = arith.constant 0 : index
    %146 = vector.load %arg8[%145, %c0_48, %c0_49] : memref<8x8x1xf32, #tpu.memory_space<vmem>>, vector<1x8x1xf32>
    %147 = vector.shape_cast %146 : vector<1x8x1xf32> to vector<8x1xf32>
    %148 = vector.shape_cast %144 : vector<8x1xf32> to vector<1x8x1xf32>
    tpu.vector_store %arg8[%145, %c0_48, %c0_49], %148 {strides = array<i32>} : memref<8x8x1xf32, #tpu.memory_space<vmem>>, vector<1x8x1xf32>,
    %c2_i32 = arith.constant 2 : i32
    %cst_50 = arith.constant dense<0.000000e+00> : vector<8x128xf32>
    %149 = tpu.matmul %120, %0, %cst_50 {dimension_numbers = #tpu.dot_dimension_numbers<[1], [0], [0], [1], [0, 0, 1, 1], [], []>} : vector<8x32xf32>, vector<32x128xf32>, vector<8x128xf32> -> vector<8x128xf32>
    %150 = arith.index_cast %c2_i32 : i32 to index
    %c0_51 = arith.constant 0 : index
    %c0_52 = arith.constant 0 : index
    %151 = vector.load %arg2[%150, %c0_51, %c0_52] : memref<8x8x128xf32, #tpu.memory_space<vmem>>, vector<1x8x128xf32>
    %152 = vector.shape_cast %151 : vector<1x8x128xf32> to vector<8x128xf32>
    %153 = arith.addf %149, %152 : vector<8x128xf32>
    %154 = vector.broadcast %1 : vector<1x128xf32> to vector<8x128xf32>
    %155 = arith.addf %153, %154 : vector<8x128xf32>
    %156 = vector.extract_strided_slice %155 {offsets = [0, 0], sizes = [8, 32], strides = [1, 1]} : vector<8x128xf32> to vector<8x32xf32>
    %cst_53 = arith.constant 0.000000e+00 : f32
    %157 = vector.broadcast %cst_53 : f32 to vector<8x32xf32>
    %158 = arith.subf %157, %156 : vector<8x32xf32>
    %159 = math.exp %158 : vector<8x32xf32>
    %cst_54 = arith.constant 1.000000e+00 : f32
    %160 = vector.broadcast %cst_54 : f32 to vector<8x32xf32>
    %161 = arith.addf %160, %159 : vector<8x32xf32>
    %cst_55 = arith.constant 1.000000e+00 : f32
    %162 = vector.broadcast %cst_55 : f32 to vector<8x32xf32>
    %163 = arith.divf %162, %161 : vector<8x32xf32>
    %164 = vector.extract_strided_slice %155 {offsets = [0, 32], sizes = [8, 32], strides = [1, 1]} : vector<8x128xf32> to vector<8x32xf32>
    %cst_56 = arith.constant 0.000000e+00 : f32
    %165 = vector.broadcast %cst_56 : f32 to vector<8x32xf32>
    %166 = arith.subf %165, %164 : vector<8x32xf32>
    %167 = math.exp %166 : vector<8x32xf32>
    %cst_57 = arith.constant 1.000000e+00 : f32
    %168 = vector.broadcast %cst_57 : f32 to vector<8x32xf32>
    %169 = arith.addf %168, %167 : vector<8x32xf32>
    %cst_58 = arith.constant 1.000000e+00 : f32
    %170 = vector.broadcast %cst_58 : f32 to vector<8x32xf32>
    %171 = arith.divf %170, %169 : vector<8x32xf32>
    %172 = vector.extract_strided_slice %155 {offsets = [0, 64], sizes = [8, 32], strides = [1, 1]} : vector<8x128xf32> to vector<8x32xf32>
    %173 = math.tanh %172 : vector<8x32xf32>
    %174 = vector.extract_strided_slice %155 {offsets = [0, 96], sizes = [8, 32], strides = [1, 1]} : vector<8x128xf32> to vector<8x32xf32>
    %cst_59 = arith.constant 0.000000e+00 : f32
    %175 = vector.broadcast %cst_59 : f32 to vector<8x32xf32>
    %176 = arith.subf %175, %174 : vector<8x32xf32>
    %177 = math.exp %176 : vector<8x32xf32>
    %cst_60 = arith.constant 1.000000e+00 : f32
    %178 = vector.broadcast %cst_60 : f32 to vector<8x32xf32>
    %179 = arith.addf %178, %177 : vector<8x32xf32>
    %cst_61 = arith.constant 1.000000e+00 : f32
    %180 = vector.broadcast %cst_61 : f32 to vector<8x32xf32>
    %181 = arith.divf %180, %179 : vector<8x32xf32>
    %182 = arith.mulf %171, %123 : vector<8x32xf32>
    %183 = arith.mulf %163, %173 : vector<8x32xf32>
    %184 = arith.addf %182, %183 : vector<8x32xf32>
    %185 = math.tanh %184 : vector<8x32xf32>
    %186 = arith.mulf %181, %185 : vector<8x32xf32>
    %187 = vector.broadcast %c2_i32 : i32 to vector<8x1xi32>
    %188 = arith.cmpi sgt, %4, %187 : vector<8x1xi32>
    %189 = vector.shape_cast %188 : vector<8x1xi1> to vector<8x1xi1>
    %190 = vector.broadcast %189 : vector<8x1xi1> to vector<8x32xi1>
    %191 = arith.select %190, %186, %120 : vector<8x32xi1>, vector<8x32xf32>
    %192 = vector.shape_cast %188 : vector<8x1xi1> to vector<8x1xi1>
    %193 = vector.broadcast %192 : vector<8x1xi1> to vector<8x32xi1>
    %194 = arith.select %193, %184, %123 : vector<8x32xi1>, vector<8x32xf32>
    %cst_62 = arith.constant 0.000000e+00 : f32
    %195 = vector.shape_cast %188 : vector<8x1xi1> to vector<8x1xi1>
    %196 = vector.broadcast %195 : vector<8x1xi1> to vector<8x32xi1>
    %197 = vector.broadcast %cst_62 : f32 to vector<8x32xf32>
    %198 = arith.select %196, %186, %197 : vector<8x32xi1>, vector<8x32xf32>
    %cst_63 = arith.constant dense<0.000000e+00> : vector<8x2xf32>
    %199 = tpu.matmul %198, %2, %cst_63 {dimension_numbers = #tpu.dot_dimension_numbers<[1], [0], [0], [1], [0, 0, 1, 1], [], []>} : vector<8x32xf32>, vector<32x2xf32>, vector<8x2xf32> -> vector<8x2xf32>
    %200 = vector.broadcast %3 : vector<1x2xf32> to vector<8x2xf32>
    %201 = arith.addf %199, %200 : vector<8x2xf32>
    %202 = vector.extract_strided_slice %201 {offsets = [0, 0], sizes = [8, 1], strides = [1, 1]} : vector<8x2xf32> to vector<8x1xf32>
    %203 = math.exp %202 : vector<8x1xf32>
    %204 = arith.index_cast %c2_i32 : i32 to index
    %c0_64 = arith.constant 0 : index
    %c0_65 = arith.constant 0 : index
    %205 = vector.load %arg7[%204, %c0_64, %c0_65] : memref<8x8x1xf32, #tpu.memory_space<vmem>>, vector<1x8x1xf32>
    %206 = vector.shape_cast %205 : vector<1x8x1xf32> to vector<8x1xf32>
    %207 = vector.shape_cast %203 : vector<8x1xf32> to vector<1x8x1xf32>
    tpu.vector_store %arg7[%204, %c0_64, %c0_65], %207 {strides = array<i32>} : memref<8x8x1xf32, #tpu.memory_space<vmem>>, vector<1x8x1xf32>,
    %208 = vector.extract_strided_slice %201 {offsets = [0, 1], sizes = [8, 1], strides = [1, 1]} : vector<8x2xf32> to vector<8x1xf32>
    %cst_66 = arith.constant 2.000000e+01 : f32
    %209 = vector.broadcast %cst_66 : f32 to vector<8x1xf32>
    %210 = arith.cmpf ogt, %208, %209 : vector<8x1xf32>
    %cst_67 = arith.constant 2.000000e+01 : f32
    %211 = vector.broadcast %cst_67 : f32 to vector<8x1xf32>
    %212 = arith.minimumf %208, %211 : vector<8x1xf32>
    %213 = math.exp %212 : vector<8x1xf32>
    %214 = math.log1p %213 : vector<8x1xf32>
    %215 = arith.select %210, %208, %214 : vector<8x1xi1>, vector<8x1xf32>
    %216 = arith.index_cast %c2_i32 : i32 to index
    %c0_68 = arith.constant 0 : index
    %c0_69 = arith.constant 0 : index
    %217 = vector.load %arg8[%216, %c0_68, %c0_69] : memref<8x8x1xf32, #tpu.memory_space<vmem>>, vector<1x8x1xf32>
    %218 = vector.shape_cast %217 : vector<1x8x1xf32> to vector<8x1xf32>
    %219 = vector.shape_cast %215 : vector<8x1xf32> to vector<1x8x1xf32>
    tpu.vector_store %arg8[%216, %c0_68, %c0_69], %219 {strides = array<i32>} : memref<8x8x1xf32, #tpu.memory_space<vmem>>, vector<1x8x1xf32>,
    %c3_i32 = arith.constant 3 : i32
    %cst_70 = arith.constant dense<0.000000e+00> : vector<8x128xf32>
    %220 = tpu.matmul %191, %0, %cst_70 {dimension_numbers = #tpu.dot_dimension_numbers<[1], [0], [0], [1], [0, 0, 1, 1], [], []>} : vector<8x32xf32>, vector<32x128xf32>, vector<8x128xf32> -> vector<8x128xf32>
    %221 = arith.index_cast %c3_i32 : i32 to index
    %c0_71 = arith.constant 0 : index
    %c0_72 = arith.constant 0 : index
    %222 = vector.load %arg2[%221, %c0_71, %c0_72] : memref<8x8x128xf32, #tpu.memory_space<vmem>>, vector<1x8x128xf32>
    %223 = vector.shape_cast %222 : vector<1x8x128xf32> to vector<8x128xf32>
    %224 = arith.addf %220, %223 : vector<8x128xf32>
    %225 = vector.broadcast %1 : vector<1x128xf32> to vector<8x128xf32>
    %226 = arith.addf %224, %225 : vector<8x128xf32>
    %227 = vector.extract_strided_slice %226 {offsets = [0, 0], sizes = [8, 32], strides = [1, 1]} : vector<8x128xf32> to vector<8x32xf32>
    %cst_73 = arith.constant 0.000000e+00 : f32
    %228 = vector.broadcast %cst_73 : f32 to vector<8x32xf32>
    %229 = arith.subf %228, %227 : vector<8x32xf32>
    %230 = math.exp %229 : vector<8x32xf32>
    %cst_74 = arith.constant 1.000000e+00 : f32
    %231 = vector.broadcast %cst_74 : f32 to vector<8x32xf32>
    %232 = arith.addf %231, %230 : vector<8x32xf32>
    %cst_75 = arith.constant 1.000000e+00 : f32
    %233 = vector.broadcast %cst_75 : f32 to vector<8x32xf32>
    %234 = arith.divf %233, %232 : vector<8x32xf32>
    %235 = vector.extract_strided_slice %226 {offsets = [0, 32], sizes = [8, 32], strides = [1, 1]} : vector<8x128xf32> to vector<8x32xf32>
    %cst_76 = arith.constant 0.000000e+00 : f32
    %236 = vector.broadcast %cst_76 : f32 to vector<8x32xf32>
    %237 = arith.subf %236, %235 : vector<8x32xf32>
    %238 = math.exp %237 : vector<8x32xf32>
    %cst_77 = arith.constant 1.000000e+00 : f32
    %239 = vector.broadcast %cst_77 : f32 to vector<8x32xf32>
    %240 = arith.addf %239, %238 : vector<8x32xf32>
    %cst_78 = arith.constant 1.000000e+00 : f32
    %241 = vector.broadcast %cst_78 : f32 to vector<8x32xf32>
    %242 = arith.divf %241, %240 : vector<8x32xf32>
    %243 = vector.extract_strided_slice %226 {offsets = [0, 64], sizes = [8, 32], strides = [1, 1]} : vector<8x128xf32> to vector<8x32xf32>
    %244 = math.tanh %243 : vector<8x32xf32>
    %245 = vector.extract_strided_slice %226 {offsets = [0, 96], sizes = [8, 32], strides = [1, 1]} : vector<8x128xf32> to vector<8x32xf32>
    %cst_79 = arith.constant 0.000000e+00 : f32
    %246 = vector.broadcast %cst_79 : f32 to vector<8x32xf32>
    %247 = arith.subf %246, %245 : vector<8x32xf32>
    %248 = math.exp %247 : vector<8x32xf32>
    %cst_80 = arith.constant 1.000000e+00 : f32
    %249 = vector.broadcast %cst_80 : f32 to vector<8x32xf32>
    %250 = arith.addf %249, %248 : vector<8x32xf32>
    %cst_81 = arith.constant 1.000000e+00 : f32
    %251 = vector.broadcast %cst_81 : f32 to vector<8x32xf32>
    %252 = arith.divf %251, %250 : vector<8x32xf32>
    %253 = arith.mulf %242, %194 : vector<8x32xf32>
    %254 = arith.mulf %234, %244 : vector<8x32xf32>
    %255 = arith.addf %253, %254 : vector<8x32xf32>
    %256 = math.tanh %255 : vector<8x32xf32>
    %257 = arith.mulf %252, %256 : vector<8x32xf32>
    %258 = vector.broadcast %c3_i32 : i32 to vector<8x1xi32>
    %259 = arith.cmpi sgt, %4, %258 : vector<8x1xi32>
    %260 = vector.shape_cast %259 : vector<8x1xi1> to vector<8x1xi1>
    %261 = vector.broadcast %260 : vector<8x1xi1> to vector<8x32xi1>
    %262 = arith.select %261, %257, %191 : vector<8x32xi1>, vector<8x32xf32>
    %263 = vector.shape_cast %259 : vector<8x1xi1> to vector<8x1xi1>
    %264 = vector.broadcast %263 : vector<8x1xi1> to vector<8x32xi1>
    %265 = arith.select %264, %255, %194 : vector<8x32xi1>, vector<8x32xf32>
    %cst_82 = arith.constant 0.000000e+00 : f32
    %266 = vector.shape_cast %259 : vector<8x1xi1> to vector<8x1xi1>
    %267 = vector.broadcast %266 : vector<8x1xi1> to vector<8x32xi1>
    %268 = vector.broadcast %cst_82 : f32 to vector<8x32xf32>
    %269 = arith.select %267, %257, %268 : vector<8x32xi1>, vector<8x32xf32>
    %cst_83 = arith.constant dense<0.000000e+00> : vector<8x2xf32>
    %270 = tpu.matmul %269, %2, %cst_83 {dimension_numbers = #tpu.dot_dimension_numbers<[1], [0], [0], [1], [0, 0, 1, 1], [], []>} : vector<8x32xf32>, vector<32x2xf32>, vector<8x2xf32> -> vector<8x2xf32>
    %271 = vector.broadcast %3 : vector<1x2xf32> to vector<8x2xf32>
    %272 = arith.addf %270, %271 : vector<8x2xf32>
    %273 = vector.extract_strided_slice %272 {offsets = [0, 0], sizes = [8, 1], strides = [1, 1]} : vector<8x2xf32> to vector<8x1xf32>
    %274 = math.exp %273 : vector<8x1xf32>
    %275 = arith.index_cast %c3_i32 : i32 to index
    %c0_84 = arith.constant 0 : index
    %c0_85 = arith.constant 0 : index
    %276 = vector.load %arg7[%275, %c0_84, %c0_85] : memref<8x8x1xf32, #tpu.memory_space<vmem>>, vector<1x8x1xf32>
    %277 = vector.shape_cast %276 : vector<1x8x1xf32> to vector<8x1xf32>
    %278 = vector.shape_cast %274 : vector<8x1xf32> to vector<1x8x1xf32>
    tpu.vector_store %arg7[%275, %c0_84, %c0_85], %278 {strides = array<i32>} : memref<8x8x1xf32, #tpu.memory_space<vmem>>, vector<1x8x1xf32>,
    %279 = vector.extract_strided_slice %272 {offsets = [0, 1], sizes = [8, 1], strides = [1, 1]} : vector<8x2xf32> to vector<8x1xf32>
    %cst_86 = arith.constant 2.000000e+01 : f32
    %280 = vector.broadcast %cst_86 : f32 to vector<8x1xf32>
    %281 = arith.cmpf ogt, %279, %280 : vector<8x1xf32>
    %cst_87 = arith.constant 2.000000e+01 : f32
    %282 = vector.broadcast %cst_87 : f32 to vector<8x1xf32>
    %283 = arith.minimumf %279, %282 : vector<8x1xf32>
    %284 = math.exp %283 : vector<8x1xf32>
    %285 = math.log1p %284 : vector<8x1xf32>
    %286 = arith.select %281, %279, %285 : vector<8x1xi1>, vector<8x1xf32>
    %287 = arith.index_cast %c3_i32 : i32 to index
    %c0_88 = arith.constant 0 : index
    %c0_89 = arith.constant 0 : index
    %288 = vector.load %arg8[%287, %c0_88, %c0_89] : memref<8x8x1xf32, #tpu.memory_space<vmem>>, vector<1x8x1xf32>
    %289 = vector.shape_cast %288 : vector<1x8x1xf32> to vector<8x1xf32>
    %290 = vector.shape_cast %286 : vector<8x1xf32> to vector<1x8x1xf32>
    tpu.vector_store %arg8[%287, %c0_88, %c0_89], %290 {strides = array<i32>} : memref<8x8x1xf32, #tpu.memory_space<vmem>>, vector<1x8x1xf32>,
    %c4_i32 = arith.constant 4 : i32
    %cst_90 = arith.constant dense<0.000000e+00> : vector<8x128xf32>
    %291 = tpu.matmul %262, %0, %cst_90 {dimension_numbers = #tpu.dot_dimension_numbers<[1], [0], [0], [1], [0, 0, 1, 1], [], []>} : vector<8x32xf32>, vector<32x128xf32>, vector<8x128xf32> -> vector<8x128xf32>
    %292 = arith.index_cast %c4_i32 : i32 to index
    %c0_91 = arith.constant 0 : index
    %c0_92 = arith.constant 0 : index
    %293 = vector.load %arg2[%292, %c0_91, %c0_92] : memref<8x8x128xf32, #tpu.memory_space<vmem>>, vector<1x8x128xf32>
    %294 = vector.shape_cast %293 : vector<1x8x128xf32> to vector<8x128xf32>
    %295 = arith.addf %291, %294 : vector<8x128xf32>
    %296 = vector.broadcast %1 : vector<1x128xf32> to vector<8x128xf32>
    %297 = arith.addf %295, %296 : vector<8x128xf32>
    %298 = vector.extract_strided_slice %297 {offsets = [0, 0], sizes = [8, 32], strides = [1, 1]} : vector<8x128xf32> to vector<8x32xf32>
    %cst_93 = arith.constant 0.000000e+00 : f32
    %299 = vector.broadcast %cst_93 : f32 to vector<8x32xf32>
    %300 = arith.subf %299, %298 : vector<8x32xf32>
    %301 = math.exp %300 : vector<8x32xf32>
    %cst_94 = arith.constant 1.000000e+00 : f32
    %302 = vector.broadcast %cst_94 : f32 to vector<8x32xf32>
    %303 = arith.addf %302, %301 : vector<8x32xf32>
    %cst_95 = arith.constant 1.000000e+00 : f32
    %304 = vector.broadcast %cst_95 : f32 to vector<8x32xf32>
    %305 = arith.divf %304, %303 : vector<8x32xf32>
    %306 = vector.extract_strided_slice %297 {offsets = [0, 32], sizes = [8, 32], strides = [1, 1]} : vector<8x128xf32> to vector<8x32xf32>
    %cst_96 = arith.constant 0.000000e+00 : f32
    %307 = vector.broadcast %cst_96 : f32 to vector<8x32xf32>
    %308 = arith.subf %307, %306 : vector<8x32xf32>
    %309 = math.exp %308 : vector<8x32xf32>
    %cst_97 = arith.constant 1.000000e+00 : f32
    %310 = vector.broadcast %cst_97 : f32 to vector<8x32xf32>
    %311 = arith.addf %310, %309 : vector<8x32xf32>
    %cst_98 = arith.constant 1.000000e+00 : f32
    %312 = vector.broadcast %cst_98 : f32 to vector<8x32xf32>
    %313 = arith.divf %312, %311 : vector<8x32xf32>
    %314 = vector.extract_strided_slice %297 {offsets = [0, 64], sizes = [8, 32], strides = [1, 1]} : vector<8x128xf32> to vector<8x32xf32>
    %315 = math.tanh %314 : vector<8x32xf32>
    %316 = vector.extract_strided_slice %297 {offsets = [0, 96], sizes = [8, 32], strides = [1, 1]} : vector<8x128xf32> to vector<8x32xf32>
    %cst_99 = arith.constant 0.000000e+00 : f32
    %317 = vector.broadcast %cst_99 : f32 to vector<8x32xf32>
    %318 = arith.subf %317, %316 : vector<8x32xf32>
    %319 = math.exp %318 : vector<8x32xf32>
    %cst_100 = arith.constant 1.000000e+00 : f32
    %320 = vector.broadcast %cst_100 : f32 to vector<8x32xf32>
    %321 = arith.addf %320, %319 : vector<8x32xf32>
    %cst_101 = arith.constant 1.000000e+00 : f32
    %322 = vector.broadcast %cst_101 : f32 to vector<8x32xf32>
    %323 = arith.divf %322, %321 : vector<8x32xf32>
    %324 = arith.mulf %313, %265 : vector<8x32xf32>
    %325 = arith.mulf %305, %315 : vector<8x32xf32>
    %326 = arith.addf %324, %325 : vector<8x32xf32>
    %327 = math.tanh %326 : vector<8x32xf32>
    %328 = arith.mulf %323, %327 : vector<8x32xf32>
    %329 = vector.broadcast %c4_i32 : i32 to vector<8x1xi32>
    %330 = arith.cmpi sgt, %4, %329 : vector<8x1xi32>
    %331 = vector.shape_cast %330 : vector<8x1xi1> to vector<8x1xi1>
    %332 = vector.broadcast %331 : vector<8x1xi1> to vector<8x32xi1>
    %333 = arith.select %332, %328, %262 : vector<8x32xi1>, vector<8x32xf32>
    %334 = vector.shape_cast %330 : vector<8x1xi1> to vector<8x1xi1>
    %335 = vector.broadcast %334 : vector<8x1xi1> to vector<8x32xi1>
    %336 = arith.select %335, %326, %265 : vector<8x32xi1>, vector<8x32xf32>
    %cst_102 = arith.constant 0.000000e+00 : f32
    %337 = vector.shape_cast %330 : vector<8x1xi1> to vector<8x1xi1>
    %338 = vector.broadcast %337 : vector<8x1xi1> to vector<8x32xi1>
    %339 = vector.broadcast %cst_102 : f32 to vector<8x32xf32>
    %340 = arith.select %338, %328, %339 : vector<8x32xi1>, vector<8x32xf32>
    %cst_103 = arith.constant dense<0.000000e+00> : vector<8x2xf32>
    %341 = tpu.matmul %340, %2, %cst_103 {dimension_numbers = #tpu.dot_dimension_numbers<[1], [0], [0], [1], [0, 0, 1, 1], [], []>} : vector<8x32xf32>, vector<32x2xf32>, vector<8x2xf32> -> vector<8x2xf32>
    %342 = vector.broadcast %3 : vector<1x2xf32> to vector<8x2xf32>
    %343 = arith.addf %341, %342 : vector<8x2xf32>
    %344 = vector.extract_strided_slice %343 {offsets = [0, 0], sizes = [8, 1], strides = [1, 1]} : vector<8x2xf32> to vector<8x1xf32>
    %345 = math.exp %344 : vector<8x1xf32>
    %346 = arith.index_cast %c4_i32 : i32 to index
    %c0_104 = arith.constant 0 : index
    %c0_105 = arith.constant 0 : index
    %347 = vector.load %arg7[%346, %c0_104, %c0_105] : memref<8x8x1xf32, #tpu.memory_space<vmem>>, vector<1x8x1xf32>
    %348 = vector.shape_cast %347 : vector<1x8x1xf32> to vector<8x1xf32>
    %349 = vector.shape_cast %345 : vector<8x1xf32> to vector<1x8x1xf32>
    tpu.vector_store %arg7[%346, %c0_104, %c0_105], %349 {strides = array<i32>} : memref<8x8x1xf32, #tpu.memory_space<vmem>>, vector<1x8x1xf32>,
    %350 = vector.extract_strided_slice %343 {offsets = [0, 1], sizes = [8, 1], strides = [1, 1]} : vector<8x2xf32> to vector<8x1xf32>
    %cst_106 = arith.constant 2.000000e+01 : f32
    %351 = vector.broadcast %cst_106 : f32 to vector<8x1xf32>
    %352 = arith.cmpf ogt, %350, %351 : vector<8x1xf32>
    %cst_107 = arith.constant 2.000000e+01 : f32
    %353 = vector.broadcast %cst_107 : f32 to vector<8x1xf32>
    %354 = arith.minimumf %350, %353 : vector<8x1xf32>
    %355 = math.exp %354 : vector<8x1xf32>
    %356 = math.log1p %355 : vector<8x1xf32>
    %357 = arith.select %352, %350, %356 : vector<8x1xi1>, vector<8x1xf32>
    %358 = arith.index_cast %c4_i32 : i32 to index
    %c0_108 = arith.constant 0 : index
    %c0_109 = arith.constant 0 : index
    %359 = vector.load %arg8[%358, %c0_108, %c0_109] : memref<8x8x1xf32, #tpu.memory_space<vmem>>, vector<1x8x1xf32>
    %360 = vector.shape_cast %359 : vector<1x8x1xf32> to vector<8x1xf32>
    %361 = vector.shape_cast %357 : vector<8x1xf32> to vector<1x8x1xf32>
    tpu.vector_store %arg8[%358, %c0_108, %c0_109], %361 {strides = array<i32>} : memref<8x8x1xf32, #tpu.memory_space<vmem>>, vector<1x8x1xf32>,
    %c5_i32 = arith.constant 5 : i32
    %cst_110 = arith.constant dense<0.000000e+00> : vector<8x128xf32>
    %362 = tpu.matmul %333, %0, %cst_110 {dimension_numbers = #tpu.dot_dimension_numbers<[1], [0], [0], [1], [0, 0, 1, 1], [], []>} : vector<8x32xf32>, vector<32x128xf32>, vector<8x128xf32> -> vector<8x128xf32>
    %363 = arith.index_cast %c5_i32 : i32 to index
    %c0_111 = arith.constant 0 : index
    %c0_112 = arith.constant 0 : index
    %364 = vector.load %arg2[%363, %c0_111, %c0_112] : memref<8x8x128xf32, #tpu.memory_space<vmem>>, vector<1x8x128xf32>
    %365 = vector.shape_cast %364 : vector<1x8x128xf32> to vector<8x128xf32>
    %366 = arith.addf %362, %365 : vector<8x128xf32>
    %367 = vector.broadcast %1 : vector<1x128xf32> to vector<8x128xf32>
    %368 = arith.addf %366, %367 : vector<8x128xf32>
    %369 = vector.extract_strided_slice %368 {offsets = [0, 0], sizes = [8, 32], strides = [1, 1]} : vector<8x128xf32> to vector<8x32xf32>
    %cst_113 = arith.constant 0.000000e+00 : f32
    %370 = vector.broadcast %cst_113 : f32 to vector<8x32xf32>
    %371 = arith.subf %370, %369 : vector<8x32xf32>
    %372 = math.exp %371 : vector<8x32xf32>
    %cst_114 = arith.constant 1.000000e+00 : f32
    %373 = vector.broadcast %cst_114 : f32 to vector<8x32xf32>
    %374 = arith.addf %373, %372 : vector<8x32xf32>
    %cst_115 = arith.constant 1.000000e+00 : f32
    %375 = vector.broadcast %cst_115 : f32 to vector<8x32xf32>
    %376 = arith.divf %375, %374 : vector<8x32xf32>
    %377 = vector.extract_strided_slice %368 {offsets = [0, 32], sizes = [8, 32], strides = [1, 1]} : vector<8x128xf32> to vector<8x32xf32>
    %cst_116 = arith.constant 0.000000e+00 : f32
    %378 = vector.broadcast %cst_116 : f32 to vector<8x32xf32>
    %379 = arith.subf %378, %377 : vector<8x32xf32>
    %380 = math.exp %379 : vector<8x32xf32>
    %cst_117 = arith.constant 1.000000e+00 : f32
    %381 = vector.broadcast %cst_117 : f32 to vector<8x32xf32>
    %382 = arith.addf %381, %380 : vector<8x32xf32>
    %cst_118 = arith.constant 1.000000e+00 : f32
    %383 = vector.broadcast %cst_118 : f32 to vector<8x32xf32>
    %384 = arith.divf %383, %382 : vector<8x32xf32>
    %385 = vector.extract_strided_slice %368 {offsets = [0, 64], sizes = [8, 32], strides = [1, 1]} : vector<8x128xf32> to vector<8x32xf32>
    %386 = math.tanh %385 : vector<8x32xf32>
    %387 = vector.extract_strided_slice %368 {offsets = [0, 96], sizes = [8, 32], strides = [1, 1]} : vector<8x128xf32> to vector<8x32xf32>
    %cst_119 = arith.constant 0.000000e+00 : f32
    %388 = vector.broadcast %cst_119 : f32 to vector<8x32xf32>
    %389 = arith.subf %388, %387 : vector<8x32xf32>
    %390 = math.exp %389 : vector<8x32xf32>
    %cst_120 = arith.constant 1.000000e+00 : f32
    %391 = vector.broadcast %cst_120 : f32 to vector<8x32xf32>
    %392 = arith.addf %391, %390 : vector<8x32xf32>
    %cst_121 = arith.constant 1.000000e+00 : f32
    %393 = vector.broadcast %cst_121 : f32 to vector<8x32xf32>
    %394 = arith.divf %393, %392 : vector<8x32xf32>
    %395 = arith.mulf %384, %336 : vector<8x32xf32>
    %396 = arith.mulf %376, %386 : vector<8x32xf32>
    %397 = arith.addf %395, %396 : vector<8x32xf32>
    %398 = math.tanh %397 : vector<8x32xf32>
    %399 = arith.mulf %394, %398 : vector<8x32xf32>
    %400 = vector.broadcast %c5_i32 : i32 to vector<8x1xi32>
    %401 = arith.cmpi sgt, %4, %400 : vector<8x1xi32>
    %402 = vector.shape_cast %401 : vector<8x1xi1> to vector<8x1xi1>
    %403 = vector.broadcast %402 : vector<8x1xi1> to vector<8x32xi1>
    %404 = arith.select %403, %399, %333 : vector<8x32xi1>, vector<8x32xf32>
    %405 = vector.shape_cast %401 : vector<8x1xi1> to vector<8x1xi1>
    %406 = vector.broadcast %405 : vector<8x1xi1> to vector<8x32xi1>
    %407 = arith.select %406, %397, %336 : vector<8x32xi1>, vector<8x32xf32>
    %cst_122 = arith.constant 0.000000e+00 : f32
    %408 = vector.shape_cast %401 : vector<8x1xi1> to vector<8x1xi1>
    %409 = vector.broadcast %408 : vector<8x1xi1> to vector<8x32xi1>
    %410 = vector.broadcast %cst_122 : f32 to vector<8x32xf32>
    %411 = arith.select %409, %399, %410 : vector<8x32xi1>, vector<8x32xf32>
    %cst_123 = arith.constant dense<0.000000e+00> : vector<8x2xf32>
    %412 = tpu.matmul %411, %2, %cst_123 {dimension_numbers = #tpu.dot_dimension_numbers<[1], [0], [0], [1], [0, 0, 1, 1], [], []>} : vector<8x32xf32>, vector<32x2xf32>, vector<8x2xf32> -> vector<8x2xf32>
    %413 = vector.broadcast %3 : vector<1x2xf32> to vector<8x2xf32>
    %414 = arith.addf %412, %413 : vector<8x2xf32>
    %415 = vector.extract_strided_slice %414 {offsets = [0, 0], sizes = [8, 1], strides = [1, 1]} : vector<8x2xf32> to vector<8x1xf32>
    %416 = math.exp %415 : vector<8x1xf32>
    %417 = arith.index_cast %c5_i32 : i32 to index
    %c0_124 = arith.constant 0 : index
    %c0_125 = arith.constant 0 : index
    %418 = vector.load %arg7[%417, %c0_124, %c0_125] : memref<8x8x1xf32, #tpu.memory_space<vmem>>, vector<1x8x1xf32>
    %419 = vector.shape_cast %418 : vector<1x8x1xf32> to vector<8x1xf32>
    %420 = vector.shape_cast %416 : vector<8x1xf32> to vector<1x8x1xf32>
    tpu.vector_store %arg7[%417, %c0_124, %c0_125], %420 {strides = array<i32>} : memref<8x8x1xf32, #tpu.memory_space<vmem>>, vector<1x8x1xf32>,
    %421 = vector.extract_strided_slice %414 {offsets = [0, 1], sizes = [8, 1], strides = [1, 1]} : vector<8x2xf32> to vector<8x1xf32>
    %cst_126 = arith.constant 2.000000e+01 : f32
    %422 = vector.broadcast %cst_126 : f32 to vector<8x1xf32>
    %423 = arith.cmpf ogt, %421, %422 : vector<8x1xf32>
    %cst_127 = arith.constant 2.000000e+01 : f32
    %424 = vector.broadcast %cst_127 : f32 to vector<8x1xf32>
    %425 = arith.minimumf %421, %424 : vector<8x1xf32>
    %426 = math.exp %425 : vector<8x1xf32>
    %427 = math.log1p %426 : vector<8x1xf32>
    %428 = arith.select %423, %421, %427 : vector<8x1xi1>, vector<8x1xf32>
    %429 = arith.index_cast %c5_i32 : i32 to index
    %c0_128 = arith.constant 0 : index
    %c0_129 = arith.constant 0 : index
    %430 = vector.load %arg8[%429, %c0_128, %c0_129] : memref<8x8x1xf32, #tpu.memory_space<vmem>>, vector<1x8x1xf32>
    %431 = vector.shape_cast %430 : vector<1x8x1xf32> to vector<8x1xf32>
    %432 = vector.shape_cast %428 : vector<8x1xf32> to vector<1x8x1xf32>
    tpu.vector_store %arg8[%429, %c0_128, %c0_129], %432 {strides = array<i32>} : memref<8x8x1xf32, #tpu.memory_space<vmem>>, vector<1x8x1xf32>,
    %c6_i32 = arith.constant 6 : i32
    %cst_130 = arith.constant dense<0.000000e+00> : vector<8x128xf32>
    %433 = tpu.matmul %404, %0, %cst_130 {dimension_numbers = #tpu.dot_dimension_numbers<[1], [0], [0], [1], [0, 0, 1, 1], [], []>} : vector<8x32xf32>, vector<32x128xf32>, vector<8x128xf32> -> vector<8x128xf32>
    %434 = arith.index_cast %c6_i32 : i32 to index
    %c0_131 = arith.constant 0 : index
    %c0_132 = arith.constant 0 : index
    %435 = vector.load %arg2[%434, %c0_131, %c0_132] : memref<8x8x128xf32, #tpu.memory_space<vmem>>, vector<1x8x128xf32>
    %436 = vector.shape_cast %435 : vector<1x8x128xf32> to vector<8x128xf32>
    %437 = arith.addf %433, %436 : vector<8x128xf32>
    %438 = vector.broadcast %1 : vector<1x128xf32> to vector<8x128xf32>
    %439 = arith.addf %437, %438 : vector<8x128xf32>
    %440 = vector.extract_strided_slice %439 {offsets = [0, 0], sizes = [8, 32], strides = [1, 1]} : vector<8x128xf32> to vector<8x32xf32>
    %cst_133 = arith.constant 0.000000e+00 : f32
    %441 = vector.broadcast %cst_133 : f32 to vector<8x32xf32>
    %442 = arith.subf %441, %440 : vector<8x32xf32>
    %443 = math.exp %442 : vector<8x32xf32>
    %cst_134 = arith.constant 1.000000e+00 : f32
    %444 = vector.broadcast %cst_134 : f32 to vector<8x32xf32>
    %445 = arith.addf %444, %443 : vector<8x32xf32>
    %cst_135 = arith.constant 1.000000e+00 : f32
    %446 = vector.broadcast %cst_135 : f32 to vector<8x32xf32>
    %447 = arith.divf %446, %445 : vector<8x32xf32>
    %448 = vector.extract_strided_slice %439 {offsets = [0, 32], sizes = [8, 32], strides = [1, 1]} : vector<8x128xf32> to vector<8x32xf32>
    %cst_136 = arith.constant 0.000000e+00 : f32
    %449 = vector.broadcast %cst_136 : f32 to vector<8x32xf32>
    %450 = arith.subf %449, %448 : vector<8x32xf32>
    %451 = math.exp %450 : vector<8x32xf32>
    %cst_137 = arith.constant 1.000000e+00 : f32
    %452 = vector.broadcast %cst_137 : f32 to vector<8x32xf32>
    %453 = arith.addf %452, %451 : vector<8x32xf32>
    %cst_138 = arith.constant 1.000000e+00 : f32
    %454 = vector.broadcast %cst_138 : f32 to vector<8x32xf32>
    %455 = arith.divf %454, %453 : vector<8x32xf32>
    %456 = vector.extract_strided_slice %439 {offsets = [0, 64], sizes = [8, 32], strides = [1, 1]} : vector<8x128xf32> to vector<8x32xf32>
    %457 = math.tanh %456 : vector<8x32xf32>
    %458 = vector.extract_strided_slice %439 {offsets = [0, 96], sizes = [8, 32], strides = [1, 1]} : vector<8x128xf32> to vector<8x32xf32>
    %cst_139 = arith.constant 0.000000e+00 : f32
    %459 = vector.broadcast %cst_139 : f32 to vector<8x32xf32>
    %460 = arith.subf %459, %458 : vector<8x32xf32>
    %461 = math.exp %460 : vector<8x32xf32>
    %cst_140 = arith.constant 1.000000e+00 : f32
    %462 = vector.broadcast %cst_140 : f32 to vector<8x32xf32>
    %463 = arith.addf %462, %461 : vector<8x32xf32>
    %cst_141 = arith.constant 1.000000e+00 : f32
    %464 = vector.broadcast %cst_141 : f32 to vector<8x32xf32>
    %465 = arith.divf %464, %463 : vector<8x32xf32>
    %466 = arith.mulf %455, %407 : vector<8x32xf32>
    %467 = arith.mulf %447, %457 : vector<8x32xf32>
    %468 = arith.addf %466, %467 : vector<8x32xf32>
    %469 = math.tanh %468 : vector<8x32xf32>
    %470 = arith.mulf %465, %469 : vector<8x32xf32>
    %471 = vector.broadcast %c6_i32 : i32 to vector<8x1xi32>
    %472 = arith.cmpi sgt, %4, %471 : vector<8x1xi32>
    %473 = vector.shape_cast %472 : vector<8x1xi1> to vector<8x1xi1>
    %474 = vector.broadcast %473 : vector<8x1xi1> to vector<8x32xi1>
    %475 = arith.select %474, %470, %404 : vector<8x32xi1>, vector<8x32xf32>
    %476 = vector.shape_cast %472 : vector<8x1xi1> to vector<8x1xi1>
    %477 = vector.broadcast %476 : vector<8x1xi1> to vector<8x32xi1>
    %478 = arith.select %477, %468, %407 : vector<8x32xi1>, vector<8x32xf32>
    %cst_142 = arith.constant 0.000000e+00 : f32
    %479 = vector.shape_cast %472 : vector<8x1xi1> to vector<8x1xi1>
    %480 = vector.broadcast %479 : vector<8x1xi1> to vector<8x32xi1>
    %481 = vector.broadcast %cst_142 : f32 to vector<8x32xf32>
    %482 = arith.select %480, %470, %481 : vector<8x32xi1>, vector<8x32xf32>
    %cst_143 = arith.constant dense<0.000000e+00> : vector<8x2xf32>
    %483 = tpu.matmul %482, %2, %cst_143 {dimension_numbers = #tpu.dot_dimension_numbers<[1], [0], [0], [1], [0, 0, 1, 1], [], []>} : vector<8x32xf32>, vector<32x2xf32>, vector<8x2xf32> -> vector<8x2xf32>
    %484 = vector.broadcast %3 : vector<1x2xf32> to vector<8x2xf32>
    %485 = arith.addf %483, %484 : vector<8x2xf32>
    %486 = vector.extract_strided_slice %485 {offsets = [0, 0], sizes = [8, 1], strides = [1, 1]} : vector<8x2xf32> to vector<8x1xf32>
    %487 = math.exp %486 : vector<8x1xf32>
    %488 = arith.index_cast %c6_i32 : i32 to index
    %c0_144 = arith.constant 0 : index
    %c0_145 = arith.constant 0 : index
    %489 = vector.load %arg7[%488, %c0_144, %c0_145] : memref<8x8x1xf32, #tpu.memory_space<vmem>>, vector<1x8x1xf32>
    %490 = vector.shape_cast %489 : vector<1x8x1xf32> to vector<8x1xf32>
    %491 = vector.shape_cast %487 : vector<8x1xf32> to vector<1x8x1xf32>
    tpu.vector_store %arg7[%488, %c0_144, %c0_145], %491 {strides = array<i32>} : memref<8x8x1xf32, #tpu.memory_space<vmem>>, vector<1x8x1xf32>,
    %492 = vector.extract_strided_slice %485 {offsets = [0, 1], sizes = [8, 1], strides = [1, 1]} : vector<8x2xf32> to vector<8x1xf32>
    %cst_146 = arith.constant 2.000000e+01 : f32
    %493 = vector.broadcast %cst_146 : f32 to vector<8x1xf32>
    %494 = arith.cmpf ogt, %492, %493 : vector<8x1xf32>
    %cst_147 = arith.constant 2.000000e+01 : f32
    %495 = vector.broadcast %cst_147 : f32 to vector<8x1xf32>
    %496 = arith.minimumf %492, %495 : vector<8x1xf32>
    %497 = math.exp %496 : vector<8x1xf32>
    %498 = math.log1p %497 : vector<8x1xf32>
    %499 = arith.select %494, %492, %498 : vector<8x1xi1>, vector<8x1xf32>
    %500 = arith.index_cast %c6_i32 : i32 to index
    %c0_148 = arith.constant 0 : index
    %c0_149 = arith.constant 0 : index
    %501 = vector.load %arg8[%500, %c0_148, %c0_149] : memref<8x8x1xf32, #tpu.memory_space<vmem>>, vector<1x8x1xf32>
    %502 = vector.shape_cast %501 : vector<1x8x1xf32> to vector<8x1xf32>
    %503 = vector.shape_cast %499 : vector<8x1xf32> to vector<1x8x1xf32>
    tpu.vector_store %arg8[%500, %c0_148, %c0_149], %503 {strides = array<i32>} : memref<8x8x1xf32, #tpu.memory_space<vmem>>, vector<1x8x1xf32>,
    %c7_i32 = arith.constant 7 : i32
    %cst_150 = arith.constant dense<0.000000e+00> : vector<8x128xf32>
    %504 = tpu.matmul %475, %0, %cst_150 {dimension_numbers = #tpu.dot_dimension_numbers<[1], [0], [0], [1], [0, 0, 1, 1], [], []>} : vector<8x32xf32>, vector<32x128xf32>, vector<8x128xf32> -> vector<8x128xf32>
    %505 = arith.index_cast %c7_i32 : i32 to index
    %c0_151 = arith.constant 0 : index
    %c0_152 = arith.constant 0 : index
    %506 = vector.load %arg2[%505, %c0_151, %c0_152] : memref<8x8x128xf32, #tpu.memory_space<vmem>>, vector<1x8x128xf32>
    %507 = vector.shape_cast %506 : vector<1x8x128xf32> to vector<8x128xf32>
    %508 = arith.addf %504, %507 : vector<8x128xf32>
    %509 = vector.broadcast %1 : vector<1x128xf32> to vector<8x128xf32>
    %510 = arith.addf %508, %509 : vector<8x128xf32>
    %511 = vector.extract_strided_slice %510 {offsets = [0, 0], sizes = [8, 32], strides = [1, 1]} : vector<8x128xf32> to vector<8x32xf32>
    %cst_153 = arith.constant 0.000000e+00 : f32
    %512 = vector.broadcast %cst_153 : f32 to vector<8x32xf32>
    %513 = arith.subf %512, %511 : vector<8x32xf32>
    %514 = math.exp %513 : vector<8x32xf32>
    %cst_154 = arith.constant 1.000000e+00 : f32
    %515 = vector.broadcast %cst_154 : f32 to vector<8x32xf32>
    %516 = arith.addf %515, %514 : vector<8x32xf32>
    %cst_155 = arith.constant 1.000000e+00 : f32
    %517 = vector.broadcast %cst_155 : f32 to vector<8x32xf32>
    %518 = arith.divf %517, %516 : vector<8x32xf32>
    %519 = vector.extract_strided_slice %510 {offsets = [0, 32], sizes = [8, 32], strides = [1, 1]} : vector<8x128xf32> to vector<8x32xf32>
    %cst_156 = arith.constant 0.000000e+00 : f32
    %520 = vector.broadcast %cst_156 : f32 to vector<8x32xf32>
    %521 = arith.subf %520, %519 : vector<8x32xf32>
    %522 = math.exp %521 : vector<8x32xf32>
    %cst_157 = arith.constant 1.000000e+00 : f32
    %523 = vector.broadcast %cst_157 : f32 to vector<8x32xf32>
    %524 = arith.addf %523, %522 : vector<8x32xf32>
    %cst_158 = arith.constant 1.000000e+00 : f32
    %525 = vector.broadcast %cst_158 : f32 to vector<8x32xf32>
    %526 = arith.divf %525, %524 : vector<8x32xf32>
    %527 = vector.extract_strided_slice %510 {offsets = [0, 64], sizes = [8, 32], strides = [1, 1]} : vector<8x128xf32> to vector<8x32xf32>
    %528 = math.tanh %527 : vector<8x32xf32>
    %529 = vector.extract_strided_slice %510 {offsets = [0, 96], sizes = [8, 32], strides = [1, 1]} : vector<8x128xf32> to vector<8x32xf32>
    %cst_159 = arith.constant 0.000000e+00 : f32
    %530 = vector.broadcast %cst_159 : f32 to vector<8x32xf32>
    %531 = arith.subf %530, %529 : vector<8x32xf32>
    %532 = math.exp %531 : vector<8x32xf32>
    %cst_160 = arith.constant 1.000000e+00 : f32
    %533 = vector.broadcast %cst_160 : f32 to vector<8x32xf32>
    %534 = arith.addf %533, %532 : vector<8x32xf32>
    %cst_161 = arith.constant 1.000000e+00 : f32
    %535 = vector.broadcast %cst_161 : f32 to vector<8x32xf32>
    %536 = arith.divf %535, %534 : vector<8x32xf32>
    %537 = arith.mulf %526, %478 : vector<8x32xf32>
    %538 = arith.mulf %518, %528 : vector<8x32xf32>
    %539 = arith.addf %537, %538 : vector<8x32xf32>
    %540 = math.tanh %539 : vector<8x32xf32>
    %541 = arith.mulf %536, %540 : vector<8x32xf32>
    %542 = vector.broadcast %c7_i32 : i32 to vector<8x1xi32>
    %543 = arith.cmpi sgt, %4, %542 : vector<8x1xi32>
    %544 = vector.shape_cast %543 : vector<8x1xi1> to vector<8x1xi1>
    %545 = vector.broadcast %544 : vector<8x1xi1> to vector<8x32xi1>
    %546 = arith.select %545, %541, %475 : vector<8x32xi1>, vector<8x32xf32>
    %547 = vector.shape_cast %543 : vector<8x1xi1> to vector<8x1xi1>
    %548 = vector.broadcast %547 : vector<8x1xi1> to vector<8x32xi1>
    %549 = arith.select %548, %539, %478 : vector<8x32xi1>, vector<8x32xf32>
    %cst_162 = arith.constant 0.000000e+00 : f32
    %550 = vector.shape_cast %543 : vector<8x1xi1> to vector<8x1xi1>
    %551 = vector.broadcast %550 : vector<8x1xi1> to vector<8x32xi1>
    %552 = vector.broadcast %cst_162 : f32 to vector<8x32xf32>
    %553 = arith.select %551, %541, %552 : vector<8x32xi1>, vector<8x32xf32>
    %cst_163 = arith.constant dense<0.000000e+00> : vector<8x2xf32>
    %554 = tpu.matmul %553, %2, %cst_163 {dimension_numbers = #tpu.dot_dimension_numbers<[1], [0], [0], [1], [0, 0, 1, 1], [], []>} : vector<8x32xf32>, vector<32x2xf32>, vector<8x2xf32> -> vector<8x2xf32>
    %555 = vector.broadcast %3 : vector<1x2xf32> to vector<8x2xf32>
    %556 = arith.addf %554, %555 : vector<8x2xf32>
    %557 = vector.extract_strided_slice %556 {offsets = [0, 0], sizes = [8, 1], strides = [1, 1]} : vector<8x2xf32> to vector<8x1xf32>
    %558 = math.exp %557 : vector<8x1xf32>
    %559 = arith.index_cast %c7_i32 : i32 to index
    %c0_164 = arith.constant 0 : index
    %c0_165 = arith.constant 0 : index
    %560 = vector.load %arg7[%559, %c0_164, %c0_165] : memref<8x8x1xf32, #tpu.memory_space<vmem>>, vector<1x8x1xf32>
    %561 = vector.shape_cast %560 : vector<1x8x1xf32> to vector<8x1xf32>
    %562 = vector.shape_cast %558 : vector<8x1xf32> to vector<1x8x1xf32>
    tpu.vector_store %arg7[%559, %c0_164, %c0_165], %562 {strides = array<i32>} : memref<8x8x1xf32, #tpu.memory_space<vmem>>, vector<1x8x1xf32>,
    %563 = vector.extract_strided_slice %556 {offsets = [0, 1], sizes = [8, 1], strides = [1, 1]} : vector<8x2xf32> to vector<8x1xf32>
    %cst_166 = arith.constant 2.000000e+01 : f32
    %564 = vector.broadcast %cst_166 : f32 to vector<8x1xf32>
    %565 = arith.cmpf ogt, %563, %564 : vector<8x1xf32>
    %cst_167 = arith.constant 2.000000e+01 : f32
    %566 = vector.broadcast %cst_167 : f32 to vector<8x1xf32>
    %567 = arith.minimumf %563, %566 : vector<8x1xf32>
    %568 = math.exp %567 : vector<8x1xf32>
    %569 = math.log1p %568 : vector<8x1xf32>
    %570 = arith.select %565, %563, %569 : vector<8x1xi1>, vector<8x1xf32>
    %571 = arith.index_cast %c7_i32 : i32 to index
    %c0_168 = arith.constant 0 : index
    %c0_169 = arith.constant 0 : index
    %572 = vector.load %arg8[%571, %c0_168, %c0_169] : memref<8x8x1xf32, #tpu.memory_space<vmem>>, vector<1x8x1xf32>
    %573 = vector.shape_cast %572 : vector<1x8x1xf32> to vector<8x1xf32>
    %574 = vector.shape_cast %570 : vector<8x1xf32> to vector<1x8x1xf32>
    tpu.vector_store %arg8[%571, %c0_168, %c0_169], %574 {strides = array<i32>} : memref<8x8x1xf32, #tpu.memory_space<vmem>>, vector<1x8x1xf32>,
    %c8_i32 = arith.constant 8 : i32
    return
  }
  func.func @transform_0(%arg0: i32) -> (i32, i32) {
    %c0_i32 = arith.constant 0 : i32
    %c0_i32_0 = arith.constant 0 : i32
    %c0_i32_1 = arith.constant 0 : i32
    return %c0_i32, %c0_i32_0 : i32, i32
  }
  func.func @transform_1(%arg0: i32) -> (i32, i32, i32) {
    %c0_i32 = arith.constant 0 : i32
    %c0_i32_0 = arith.constant 0 : i32
    %c0_i32_1 = arith.constant 0 : i32
    %c0_i32_2 = arith.constant 0 : i32
    return %c0_i32, %c0_i32_0, %c0_i32_1 : i32, i32, i32
  }
  func.func @transform_2(%arg0: i32) -> (i32, i32) {
    %c0_i32 = arith.constant 0 : i32
    %c0_i32_0 = arith.constant 0 : i32
    %c0_i32_1 = arith.constant 0 : i32
    return %c0_i32, %c0_i32_0 : i32, i32
  }
  func.func @transform_3(%arg0: i32) -> (i32, i32) {
    %c0_i32 = arith.constant 0 : i32
    %c0_i32_0 = arith.constant 0 : i32
    %c0_i32_1 = arith.constant 0 : i32
    return %c0_i32, %c0_i32_0 : i32, i32
  }
  func.func @transform_4(%arg0: i32) -> (i32, i32) {
    %c0_i32 = arith.constant 0 : i32
    %c0_i32_0 = arith.constant 0 : i32
    %c0_i32_1 = arith.constant 0 : i32
    return %c0_i32, %c0_i32_0 : i32, i32
  }
  func.func @transform_5(%arg0: i32) -> (i32, i32) {
    %c0_i32 = arith.constant 0 : i32
    %c0_i32_0 = arith.constant 0 : i32
    %c0_i32_1 = arith.constant 0 : i32
    return %c0_i32, %c0_i32_0 : i32, i32
  }
  func.func @transform_6(%arg0: i32) -> (i32, i32, i32) {
    %c0_i32 = arith.constant 0 : i32
    %c0_i32_0 = arith.constant 0 : i32
    %c0_i32_1 = arith.constant 0 : i32
    %c0_i32_2 = arith.constant 0 : i32
    return %c0_i32, %c0_i32_0, %c0_i32_1 : i32, i32, i32
  }
  func.func @transform_7(%arg0: i32) -> (i32, i32, i32) {
    %c0_i32 = arith.constant 0 : i32
    %c0_i32_0 = arith.constant 0 : i32
    %c0_i32_1 = arith.constant 0 : i32
    %c0_i32_2 = arith.constant 0 : i32
    return %c0_i32, %c0_i32_0, %c0_i32_1 : i32, i32, i32
  }
}

</mosaic_0001>

<llo_original>
// kernel: tpu_custom_call.1
$region0: #{tpu_custom_call.1}
  #allocation0 [shape = 'u32[]', space=smem, size = 0x4, offset = 0x4, fixed_abs, tag = 'smem constant byte address 0x4 - core index']
  #allocation1 [shape = 'u32[72,128]{1,0:T(1,128)}', space=vmem, size = 0x9000, scoped, tag = 'internal scratch']
  %s0 = inlined_call_operand.vmem [shape: s32[8,1], index: 0, kind: input, shape index: {}]
  %s1 = inlined_call_operand.hbm [shape: f32[8,8,128], index: 1, kind: input, shape index: {}]
  %s2 = inlined_call_operand.vmem [shape: f32[32,128], index: 2, kind: input, shape index: {}]
  %s3 = inlined_call_operand.vmem [shape: f32[1,128], index: 3, kind: input, shape index: {}]
  %s4 = inlined_call_operand.vmem [shape: f32[32,2], index: 4, kind: input, shape index: {}]
  %s5 = inlined_call_operand.vmem [shape: f32[1,2], index: 5, kind: input, shape index: {}]
  %s6 = inlined_call_operand.vmem [shape: f32[8,8,1], index: 6, kind: output, shape index: {0}]
  %s7 = inlined_call_operand.vmem [shape: f32[8,8,1], index: 7, kind: output, shape index: {1}]
  %8 = xla_tuple %s6, %s7
  %s9 = sld [smem:[#allocation0]]
  $region46: #{tpu_custom_call.1} parent=0
    _
  %s11 = ssub.s32 1, %s9
  %s12 = scalar_select 0, %s11, %s9
  $region1: #{tpu_custom_call.1} parent=0
    #allocation2 [shape = 'u8[32768]{0}', space=vmem, size = 0x8000, scoped, tag = 'input window, operand 1, single buffered']
    #allocation3 [shape = 's32[1]{0}', space=sflag, size = 0x4, scoped, tag = 'scoped memory for tpu_custom_call.1']
    %13 = vsyncpa [#allocation3], 0
    // Predicated region
    $region2: #{tpu_custom_call.1} parent=1 // pred_check
      _
    $region3: #{tpu_custom_call.1} parent=1 // pred_check_branch
      %15 = sbr.rel (0) target = $region5
    $region4: #{tpu_custom_call.1} parent=1 // pred_region
      _
    $region5: #{tpu_custom_call.1} parent=1 // pred_fallthru
      _
    // Predicated region
    $region6: #{tpu_custom_call.1} parent=1 // pred_check
      _
    $region7: #{tpu_custom_call.1} parent=1 // pred_check_branch
      %17 = sbr.rel (0) target = $region9
    $region8: #{tpu_custom_call.1} parent=1 // pred_region
      %19 = vsyncadd [#allocation3], 0
      %s20 = sshll.u32 %s1, 4
      %s21 = int_to_ptr.hbm [resolvable:$true] %s20
      %s22 = sshll.u32 [#allocation2], 4
      %s23 = int_to_ptr.vmem [resolvable:$true] %s22
      %28 = dma.hbm_to_vmem [thread:$0]  %s21, 1024, %s23, [#allocation3], 128, 128, 8
    $region9: #{tpu_custom_call.1} parent=1 // pred_fallthru
      _
    // Predicated region
    $region10: #{tpu_custom_call.1} parent=1 // pred_check
      _
    $region11: #{tpu_custom_call.1} parent=1 // pred_check_branch
      %30 = sbr.rel (0) target = $region13
    $region12: #{tpu_custom_call.1} parent=1 // pred_region
      _
    $region13: #{tpu_custom_call.1} parent=1 // pred_fallthru
      _
    // Predicated region
    $region14: #{tpu_custom_call.1} parent=1 // pred_check
      _
    $region15: #{tpu_custom_call.1} parent=1 // pred_check_branch
      %32 = sbr.rel (0) target = $region17
    $region16: #{tpu_custom_call.1} parent=1 // pred_region
      _
    $region17: #{tpu_custom_call.1} parent=1 // pred_fallthru
      _
    // Predicated region
    $region18: #{tpu_custom_call.1} parent=1 // pred_check
      _
    $region19: #{tpu_custom_call.1} parent=1 // pred_check_branch
      %34 = sbr.rel (0) target = $region21
    $region20: #{tpu_custom_call.1} parent=1 // pred_region
      _
    $region21: #{tpu_custom_call.1} parent=1 // pred_fallthru
      _
    // Predicated region
    $region22: #{tpu_custom_call.1} parent=1 // pred_check
      _
    $region23: #{tpu_custom_call.1} parent=1 // pred_check_branch
      %36 = sbr.rel (0) target = $region25
    $region24: #{tpu_custom_call.1} parent=1 // pred_region
      _
    $region25: #{tpu_custom_call.1} parent=1 // pred_fallthru
      _
    // Predicated region
    $region26: #{tpu_custom_call.1} parent=1 // pred_check
      _
    $region27: #{tpu_custom_call.1} parent=1 // pred_check_branch
      %38 = sbr.rel (0) target = $region29
    $region28: #{tpu_custom_call.1} parent=1 // pred_region
      %40 = dma.done [#allocation3], 1024
    $region29: #{tpu_custom_call.1} parent=1 // pred_fallthru
      _
    %v41 = vld [vmem:[%s2] sm:$0xff]
    %v42 = vld [vmem:[%s2 + $0x8] sm:$0xff]
    %v43 = vld [vmem:[%s2 + $0x10] sm:$0xff]
    %v44 = vld [vmem:[%s2 + $0x18] sm:$0xff]
    %v45 = vld [vmem:[%s3] sm:$0x1]
    %v46 = vld [vmem:[%s4] sm:$0xff]
    %v47 = vld [vmem:[%s4 + $0x8] sm:$0xff]
    %v48 = vld [vmem:[%s4 + $0x10] sm:$0xff]
    %v49 = vld [vmem:[%s4 + $0x18] sm:$0xff]
    %v50 = vld [vmem:[%s5] sm:$0x1]
    %v51 = vld [vmem:[%s0] sm:$0xff]
    %v52 = vld [vmem:[#allocation2] sm:$0xff]
    %vm53 = vcmask 261120
    %v55 = vsel %vm53, 0.0, 0
    %57 = vmatpush.msra.mxu0 0.0
    %58 = vmatpush.msra.mxu0 0.0
    %59 = vmatpush.msra.mxu0 0.0
    %60 = vmatpush.msra.mxu0 0.0
    %61 = vmatpush.msra.mxu0 0.0
    %62 = vmatpush.msra.mxu0 0.0
    %63 = vmatpush.msra.mxu0 0.0
    %64 = vmatpush.msra.mxu0 0.0
    %65 = vmatpush.msra.mxu0 0.0
    %66 = vmatpush.msra.mxu0 0.0
    %67 = vmatpush.msra.mxu0 0.0
    %68 = vmatpush.msra.mxu0 0.0
    %69 = vmatpush.msra.mxu0 %v44
    %70 = vmatpush.msra.mxu0 %v43
    %71 = vmatpush.msra.mxu0 %v42
    %72 = vmatpush.msra.mxu0 %v41
    %73 = vmatmul.f32.gmra.mxu0 %v55
    %v74 = vpop.f32.mrf.mxu0
    %v75 = vadd.f32 %v52, %v74
    %76 = vdwg.mxu0
    %v78 = vperm.slane %v45, 0
    %v80 = vadd.f32 %v75, %v78
    %v81 = vsub.f32 0.0, %v80
    %v82 = vmul.f32 %v81, 1.442695
    %v83 = vpow.pop %v82
    %v84 = vadd.f32 %v83, 1.0
    %v85 = vrcp.pop %v84
    %v86 = vmul.f32 %v84, %v85
    %v87 = vsub.f32 1.0, %v86
    %v88 = vmul.f32 %v85, %v87
    %v89 = vadd.f32 %v85, %v88
    %vm90 = vweird.f32 %v84
    %vm91 = vweird.f32 %v85
    %vm92 = vmor %vm90, %vm91
    %v93 = vsel %vm92, %v85, %v89
    %v94 = vand.u32 2147483647, %v84
    %vm95 = vcmp.eq.f32.partialorder %v94, 8.507059e+37
    %v96 = vand.u32 %v84, 2147483648
    %v97 = vor.u32 1.1754944e-38, %v96
    %v98 = vsel %vm95, %v97, %v93
    %v99 = vmul.f32 1.0, %v98
    %v100 = vtanh.pop %v80
    %v101 = vmul.f32 %v99, 0.0
    %103 = vrot.lane.b32.xlu0 %v100, 64
    %v104 = vpop.permute.xlu0 %103
    %v106 = vmul.f32 %v99, %v104
    %108 = vrot.lane.b32.xlu0 %v106, 32
    %v109 = vpop.permute.xlu0 %108
    %v111 = vadd.f32 %v101, %v109
    %v112 = vtanh.pop %v111
    %114 = vrot.lane.b32.xlu0 %v112, 64
    %v115 = vpop.permute.xlu0 %114
    %v117 = vmul.f32 %v99, %v115
    %vm118 = vcmp.gt.s32.totalorder %v51, 0
    %v119 = vsel %vm118, 1, 0
    %120 = vset.pattern.permute.xlu0 0
    %121 = vperm.xlu0 %120, %v119
    %v122 = vpop.permute.xlu0 %121
    %vm123 = vcmp.eq.s32.totalorder %v122, 1
    %v124 = vsel %vm123, %v117, 0.0
    %v125 = vsel %vm123, %v111, 0.0
    %v127 = vperm.slane %v50, 0
    %130 = vrot.lane.b32.xlu0 %v124, 32
    %v131 = vpop.permute.xlu0 %130
    %v132 = vsel %vm53, %v131, 0
    %134 = vmatpush.msra.mxu0 0.0
    %135 = vmatpush.msra.mxu0 0.0
    %136 = vmatpush.msra.mxu0 0.0
    %137 = vmatpush.msra.mxu0 0.0
    %138 = vmatpush.msra.mxu0 0.0
    %139 = vmatpush.msra.mxu0 0.0
    %140 = vmatpush.msra.mxu0 0.0
    %141 = vmatpush.msra.mxu0 0.0
    %142 = vmatpush.msra.mxu0 0.0
    %143 = vmatpush.msra.mxu0 0.0
    %144 = vmatpush.msra.mxu0 0.0
    %145 = vmatpush.msra.mxu0 0.0
    %146 = vmatpush.msra.mxu0 %v49
    %147 = vmatpush.msra.mxu0 %v48
    %148 = vmatpush.msra.mxu0 %v47
    %149 = vmatpush.msra.mxu0 %v46
    %150 = vmatmul.f32.gmra.mxu0 %v132
    %v151 = vpop.f32.mrf.mxu0
    %v152 = vadd.f32 %v127, %v151
    %153 = vdwg.mxu0
    %v154 = vmul.f32 %v152, 1.442695
    %v155 = vpow.pop %v154
    %vm156 = vcmask 7168
    %157 = vst.msk [vmem:[%s6] sm:$0xff] %vm156, %v155
    %vm158 = vcmp.gt.f32.partialorder %v152, 20.0
    %v159 = vmin.f32 %v152, 20.0
    %v160 = vmul.f32 %v159, 1.442695
    %v161 = vpow.pop %v160
    %v162 = vadd.f32 %v161, 1.0
    %v163 = vlog2.pop %v162
    %v164 = vmul.f32 %v163, 0.6931472
    %v165 = vmul.f32 -0.5, %v161
    %v166 = vadd.f32 %v165, 1.0
    %v167 = vmul.f32 %v166, %v161
    %v168 = vand.u32 2147483647, %v161
    %vm169 = vcmp.lt.f32.partialorder %v168, 0.0004427343
    %v170 = vsel %vm169, %v167, %v164
    %v171 = vsel %vm158, %v152, %v170
    %173 = vrot.lane.b32.xlu0 %v171, 127
    %v174 = vpop.permute.xlu0 %173
    %176 = vst.msk [vmem:[%s7] sm:$0xff] %vm156, %v174
    %s177 = scalar_lea.vmem [#allocation2], 8
    %v178 = vld [vmem:[%s177] sm:$0xff]
    %179 = vmatpush.msra.mxu0 0.0
    %180 = vmatpush.msra.mxu0 0.0
    %181 = vmatpush.msra.mxu0 0.0
    %182 = vmatpush.msra.mxu0 0.0
    %183 = vmatpush.msra.mxu0 0.0
    %184 = vmatpush.msra.mxu0 0.0
    %185 = vmatpush.msra.mxu0 0.0
    %186 = vmatpush.msra.mxu0 0.0
    %187 = vmatpush.msra.mxu0 0.0
    %188 = vmatpush.msra.mxu0 0.0
    %189 = vmatpush.msra.mxu0 0.0
    %190 = vmatpush.msra.mxu0 0.0
    %191 = vmatpush.msra.mxu0 %v44
    %192 = vmatpush.msra.mxu0 %v43
    %193 = vmatpush.msra.mxu0 %v42
    %194 = vmatpush.msra.mxu0 %v41
    %195 = vmatmul.f32.gmra.mxu0 %v132
    %v196 = vpop.f32.mrf.mxu0
    %v197 = vadd.f32 %v178, %v196
    %198 = vdwg.mxu0
    %v199 = vadd.f32 %v197, %v78
    %v200 = vsub.f32 0.0, %v199
    %v201 = vmul.f32 %v200, 1.442695
    %v202 = vpow.pop %v201
    %v203 = vadd.f32 %v202, 1.0
    %v204 = vrcp.pop %v203
    %v205 = vmul.f32 %v203, %v204
    %v206 = vsub.f32 1.0, %v205
    %v207 = vmul.f32 %v204, %v206
    %v208 = vadd.f32 %v204, %v207
    %vm209 = vweird.f32 %v203
    %vm210 = vweird.f32 %v204
    %vm211 = vmor %vm209, %vm210
    %v212 = vsel %vm211, %v204, %v208
    %v213 = vand.u32 2147483647, %v203
    %vm214 = vcmp.eq.f32.partialorder %v213, 8.507059e+37
    %v215 = vand.u32 %v203, 2147483648
    %v216 = vor.u32 1.1754944e-38, %v215
    %v217 = vsel %vm214, %v216, %v212
    %v218 = vmul.f32 1.0, %v217
    %v219 = vtanh.pop %v199
    %v220 = vmul.f32 %v218, %v125
    %222 = vrot.lane.b32.xlu0 %v219, 64
    %v223 = vpop.permute.xlu0 %222
    %v225 = vmul.f32 %v218, %v223
    %227 = vrot.lane.b32.xlu0 %v225, 32
    %v228 = vpop.permute.xlu0 %227
    %v230 = vadd.f32 %v220, %v228
    %v231 = vtanh.pop %v230
    %233 = vrot.lane.b32.xlu0 %v231, 64
    %v234 = vpop.permute.xlu0 %233
    %v236 = vmul.f32 %v218, %v234
    %vm237 = vcmp.gt.s32.totalorder %v51, 1
    %v238 = vsel %vm237, 1, 0
    %239 = vset.pattern.permute.xlu0 0
    %240 = vperm.xlu0 %239, %v238
    %v241 = vpop.permute.xlu0 %240
    %vm242 = vcmp.eq.s32.totalorder %v241, 1
    %v243 = vsel %vm242, %v236, %v124
    %v244 = vsel %vm242, %v230, %v125
    %v245 = vsel %vm242, %v236, 0.0
    %247 = vrot.lane.b32.xlu0 %v245, 32
    %v248 = vpop.permute.xlu0 %247
    %v249 = vsel %vm53, %v248, 0
    %251 = vmatpush.msra.mxu0 0.0
    %252 = vmatpush.msra.mxu0 0.0
    %253 = vmatpush.msra.mxu0 0.0
    %254 = vmatpush.msra.mxu0 0.0
    %255 = vmatpush.msra.mxu0 0.0
    %256 = vmatpush.msra.mxu0 0.0
    %257 = vmatpush.msra.mxu0 0.0
    %258 = vmatpush.msra.mxu0 0.0
    %259 = vmatpush.msra.mxu0 0.0
    %260 = vmatpush.msra.mxu0 0.0
    %261 = vmatpush.msra.mxu0 0.0
    %262 = vmatpush.msra.mxu0 0.0
    %263 = vmatpush.msra.mxu0 %v49
    %264 = vmatpush.msra.mxu0 %v48
    %265 = vmatpush.msra.mxu0 %v47
    %266 = vmatpush.msra.mxu0 %v46
    %267 = vmatmul.f32.gmra.mxu0 %v249
    %v268 = vpop.f32.mrf.mxu0
    %v269 = vadd.f32 %v127, %v268
    %270 = vdwg.mxu0
    %v271 = vmul.f32 %v269, 1.442695
    %v272 = vpow.pop %v271
    %s273 = scalar_lea.vmem %s6, 8
    %274 = vst.msk [vmem:[%s273] sm:$0xff] %vm156, %v272
    %vm275 = vcmp.gt.f32.partialorder %v269, 20.0
    %v276 = vmin.f32 %v269, 20.0
    %v277 = vmul.f32 %v276, 1.442695
    %v278 = vpow.pop %v277
    %v279 = vadd.f32 %v278, 1.0
    %v280 = vlog2.pop %v279
    %v281 = vmul.f32 %v280, 0.6931472
    %v282 = vmul.f32 -0.5, %v278
    %v283 = vadd.f32 %v282, 1.0
    %v284 = vmul.f32 %v283, %v278
    %v285 = vand.u32 2147483647, %v278
    %vm286 = vcmp.lt.f32.partialorder %v285, 0.0004427343
    %v287 = vsel %vm286, %v284, %v281
    %v288 = vsel %vm275, %v269, %v287
    %290 = vrot.lane.b32.xlu0 %v288, 127
    %v291 = vpop.permute.xlu0 %290
    %s293 = scalar_lea.vmem %s7, 8
    %294 = vst.msk [vmem:[%s293] sm:$0xff] %vm156, %v291
    %s295 = scalar_lea.vmem [#allocation2], 16
    %v296 = vld [vmem:[%s295] sm:$0xff]
    %298 = vrot.lane.b32.xlu0 %v243, 32
    %v299 = vpop.permute.xlu0 %298
    %v300 = vsel %vm53, %v299, 0
    %302 = vmatpush.msra.mxu0 0.0
    %303 = vmatpush.msra.mxu0 0.0
    %304 = vmatpush.msra.mxu0 0.0
    %305 = vmatpush.msra.mxu0 0.0
    %306 = vmatpush.msra.mxu0 0.0
    %307 = vmatpush.msra.mxu0 0.0
    %308 = vmatpush.msra.mxu0 0.0
    %309 = vmatpush.msra.mxu0 0.0
    %310 = vmatpush.msra.mxu0 0.0
    %311 = vmatpush.msra.mxu0 0.0
    %312 = vmatpush.msra.mxu0 0.0
    %313 = vmatpush.msra.mxu0 0.0
    %314 = vmatpush.msra.mxu0 %v44
    %315 = vmatpush.msra.mxu0 %v43
    %316 = vmatpush.msra.mxu0 %v42
    %317 = vmatpush.msra.mxu0 %v41
    %318 = vmatmul.f32.gmra.mxu0 %v300
    %v319 = vpop.f32.mrf.mxu0
    %v320 = vadd.f32 %v296, %v319
    %321 = vdwg.mxu0
    %v322 = vadd.f32 %v320, %v78
    %v323 = vsub.f32 0.0, %v322
    %v324 = vmul.f32 %v323, 1.442695
    %v325 = vpow.pop %v324
    %v326 = vadd.f32 %v325, 1.0
    %v327 = vrcp.pop %v326
    %v328 = vmul.f32 %v326, %v327
    %v329 = vsub.f32 1.0, %v328
    %v330 = vmul.f32 %v327, %v329
    %v331 = vadd.f32 %v327, %v330
    %vm332 = vweird.f32 %v326
    %vm333 = vweird.f32 %v327
    %vm334 = vmor %vm332, %vm333
    %v335 = vsel %vm334, %v327, %v331
    %v336 = vand.u32 2147483647, %v326
    %vm337 = vcmp.eq.f32.partialorder %v336, 8.507059e+37
    %v338 = vand.u32 %v326, 2147483648
    %v339 = vor.u32 1.1754944e-38, %v338
    %v340 = vsel %vm337, %v339, %v335
    %v341 = vmul.f32 1.0, %v340
    %v342 = vtanh.pop %v322
    %v343 = vmul.f32 %v341, %v244
    %345 = vrot.lane.b32.xlu0 %v342, 64
    %v346 = vpop.permute.xlu0 %345
    %v348 = vmul.f32 %v341, %v346
    %350 = vrot.lane.b32.xlu0 %v348, 32
    %v351 = vpop.permute.xlu0 %350
    %v353 = vadd.f32 %v343, %v351
    %v354 = vtanh.pop %v353
    %356 = vrot.lane.b32.xlu0 %v354, 64
    %v357 = vpop.permute.xlu0 %356
    %v359 = vmul.f32 %v341, %v357
    %vm360 = vcmp.gt.s32.totalorder %v51, 2
    %v361 = vsel %vm360, 1, 0
    %362 = vset.pattern.permute.xlu0 0
    %363 = vperm.xlu0 %362, %v361
    %v364 = vpop.permute.xlu0 %363
    %vm365 = vcmp.eq.s32.totalorder %v364, 1
    %v366 = vsel %vm365, %v359, %v243
    %v367 = vsel %vm365, %v353, %v244
    %v368 = vsel %vm365, %v359, 0.0
    %370 = vrot.lane.b32.xlu0 %v368, 32
    %v371 = vpop.permute.xlu0 %370
    %v372 = vsel %vm53, %v371, 0
    %374 = vmatpush.msra.mxu0 0.0
    %375 = vmatpush.msra.mxu0 0.0
    %376 = vmatpush.msra.mxu0 0.0
    %377 = vmatpush.msra.mxu0 0.0
    %378 = vmatpush.msra.mxu0 0.0
    %379 = vmatpush.msra.mxu0 0.0
    %380 = vmatpush.msra.mxu0 0.0
    %381 = vmatpush.msra.mxu0 0.0
    %382 = vmatpush.msra.mxu0 0.0
    %383 = vmatpush.msra.mxu0 0.0
    %384 = vmatpush.msra.mxu0 0.0
    %385 = vmatpush.msra.mxu0 0.0
    %386 = vmatpush.msra.mxu0 %v49
    %387 = vmatpush.msra.mxu0 %v48
    %388 = vmatpush.msra.mxu0 %v47
    %389 = vmatpush.msra.mxu0 %v46
    %390 = vmatmul.f32.gmra.mxu0 %v372
    %v391 = vpop.f32.mrf.mxu0
    %v392 = vadd.f32 %v127, %v391
    %393 = vdwg.mxu0
    %v394 = vmul.f32 %v392, 1.442695
    %v395 = vpow.pop %v394
    %s396 = scalar_lea.vmem %s6, 16
    %397 = vst.msk [vmem:[%s396] sm:$0xff] %vm156, %v395
    %vm398 = vcmp.gt.f32.partialorder %v392, 20.0
    %v399 = vmin.f32 %v392, 20.0
    %v400 = vmul.f32 %v399, 1.442695
    %v401 = vpow.pop %v400
    %v402 = vadd.f32 %v401, 1.0
    %v403 = vlog2.pop %v402
    %v404 = vmul.f32 %v403, 0.6931472
    %v405 = vmul.f32 -0.5, %v401
    %v406 = vadd.f32 %v405, 1.0
    %v407 = vmul.f32 %v406, %v401
    %v408 = vand.u32 2147483647, %v401
    %vm409 = vcmp.lt.f32.partialorder %v408, 0.0004427343
    %v410 = vsel %vm409, %v407, %v404
    %v411 = vsel %vm398, %v392, %v410
    %413 = vrot.lane.b32.xlu0 %v411, 127
    %v414 = vpop.permute.xlu0 %413
    %s416 = scalar_lea.vmem %s7, 16
    %417 = vst.msk [vmem:[%s416] sm:$0xff] %vm156, %v414
    %s418 = scalar_lea.vmem [#allocation2], 24
    %v419 = vld [vmem:[%s418] sm:$0xff]
    %421 = vrot.lane.b32.xlu0 %v366, 32
    %v422 = vpop.permute.xlu0 %421
    %v423 = vsel %vm53, %v422, 0
    %425 = vmatpush.msra.mxu0 0.0
    %426 = vmatpush.msra.mxu0 0.0
    %427 = vmatpush.msra.mxu0 0.0
    %428 = vmatpush.msra.mxu0 0.0
    %429 = vmatpush.msra.mxu0 0.0
    %430 = vmatpush.msra.mxu0 0.0
    %431 = vmatpush.msra.mxu0 0.0
    %432 = vmatpush.msra.mxu0 0.0
    %433 = vmatpush.msra.mxu0 0.0
    %434 = vmatpush.msra.mxu0 0.0
    %435 = vmatpush.msra.mxu0 0.0
    %436 = vmatpush.msra.mxu0 0.0
    %437 = vmatpush.msra.mxu0 %v44
    %438 = vmatpush.msra.mxu0 %v43
    %439 = vmatpush.msra.mxu0 %v42
    %440 = vmatpush.msra.mxu0 %v41
    %441 = vmatmul.f32.gmra.mxu0 %v423
    %v442 = vpop.f32.mrf.mxu0
    %v443 = vadd.f32 %v419, %v442
    %444 = vdwg.mxu0
    %v445 = vadd.f32 %v443, %v78
    %v446 = vsub.f32 0.0, %v445
    %v447 = vmul.f32 %v446, 1.442695
    %v448 = vpow.pop %v447
    %v449 = vadd.f32 %v448, 1.0
    %v450 = vrcp.pop %v449
    %v451 = vmul.f32 %v449, %v450
    %v452 = vsub.f32 1.0, %v451
    %v453 = vmul.f32 %v450, %v452
    %v454 = vadd.f32 %v450, %v453
    %vm455 = vweird.f32 %v449
    %vm456 = vweird.f32 %v450
    %vm457 = vmor %vm455, %vm456
    %v458 = vsel %vm457, %v450, %v454
    %v459 = vand.u32 2147483647, %v449
    %vm460 = vcmp.eq.f32.partialorder %v459, 8.507059e+37
    %v461 = vand.u32 %v449, 2147483648
    %v462 = vor.u32 1.1754944e-38, %v461
    %v463 = vsel %vm460, %v462, %v458
    %v464 = vmul.f32 1.0, %v463
    %v465 = vtanh.pop %v445
    %v466 = vmul.f32 %v464, %v367
    %468 = vrot.lane.b32.xlu0 %v465, 64
    %v469 = vpop.permute.xlu0 %468
    %v471 = vmul.f32 %v464, %v469
    %473 = vrot.lane.b32.xlu0 %v471, 32
    %v474 = vpop.permute.xlu0 %473
    %v476 = vadd.f32 %v466, %v474
    %v477 = vtanh.pop %v476
    %479 = vrot.lane.b32.xlu0 %v477, 64
    %v480 = vpop.permute.xlu0 %479
    %v482 = vmul.f32 %v464, %v480
    %vm483 = vcmp.gt.s32.totalorder %v51, 3
    %v484 = vsel %vm483, 1, 0
    %485 = vset.pattern.permute.xlu0 0
    %486 = vperm.xlu0 %485, %v484
    %v487 = vpop.permute.xlu0 %486
    %vm488 = vcmp.eq.s32.totalorder %v487, 1
    %v489 = vsel %vm488, %v482, %v366
    %v490 = vsel %vm488, %v476, %v367
    %v491 = vsel %vm488, %v482, 0.0
    %493 = vrot.lane.b32.xlu0 %v491, 32
    %v494 = vpop.permute.xlu0 %493
    %v495 = vsel %vm53, %v494, 0
    %497 = vmatpush.msra.mxu0 0.0
    %498 = vmatpush.msra.mxu0 0.0
    %499 = vmatpush.msra.mxu0 0.0
    %500 = vmatpush.msra.mxu0 0.0
    %501 = vmatpush.msra.mxu0 0.0
    %502 = vmatpush.msra.mxu0 0.0
    %503 = vmatpush.msra.mxu0 0.0
    %504 = vmatpush.msra.mxu0 0.0
    %505 = vmatpush.msra.mxu0 0.0
    %506 = vmatpush.msra.mxu0 0.0
    %507 = vmatpush.msra.mxu0 0.0
    %508 = vmatpush.msra.mxu0 0.0
    %509 = vmatpush.msra.mxu0 %v49
    %510 = vmatpush.msra.mxu0 %v48
    %511 = vmatpush.msra.mxu0 %v47
    %512 = vmatpush.msra.mxu0 %v46
    %513 = vmatmul.f32.gmra.mxu0 %v495
    %v514 = vpop.f32.mrf.mxu0
    %v515 = vadd.f32 %v127, %v514
    %516 = vdwg.mxu0
    %v517 = vmul.f32 %v515, 1.442695
    %v518 = vpow.pop %v517
    %s519 = scalar_lea.vmem %s6, 24
    %520 = vst.msk [vmem:[%s519] sm:$0xff] %vm156, %v518
    %vm521 = vcmp.gt.f32.partialorder %v515, 20.0
    %v522 = vmin.f32 %v515, 20.0
    %v523 = vmul.f32 %v522, 1.442695
    %v524 = vpow.pop %v523
    %v525 = vadd.f32 %v524, 1.0
    %v526 = vlog2.pop %v525
    %v527 = vmul.f32 %v526, 0.6931472
    %v528 = vmul.f32 -0.5, %v524
    %v529 = vadd.f32 %v528, 1.0
    %v530 = vmul.f32 %v529, %v524
    %v531 = vand.u32 2147483647, %v524
    %vm532 = vcmp.lt.f32.partialorder %v531, 0.0004427343
    %v533 = vsel %vm532, %v530, %v527
    %v534 = vsel %vm521, %v515, %v533
    %536 = vrot.lane.b32.xlu0 %v534, 127
    %v537 = vpop.permute.xlu0 %536
    %s539 = scalar_lea.vmem %s7, 24
    %540 = vst.msk [vmem:[%s539] sm:$0xff] %vm156, %v537
    %s541 = scalar_lea.vmem [#allocation2], 32
    %v542 = vld [vmem:[%s541] sm:$0xff]
    %544 = vrot.lane.b32.xlu0 %v489, 32
    %v545 = vpop.permute.xlu0 %544
    %v546 = vsel %vm53, %v545, 0
    %548 = vmatpush.msra.mxu0 0.0
    %549 = vmatpush.msra.mxu0 0.0
    %550 = vmatpush.msra.mxu0 0.0
    %551 = vmatpush.msra.mxu0 0.0
    %552 = vmatpush.msra.mxu0 0.0
    %553 = vmatpush.msra.mxu0 0.0
    %554 = vmatpush.msra.mxu0 0.0
    %555 = vmatpush.msra.mxu0 0.0
    %556 = vmatpush.msra.mxu0 0.0
    %557 = vmatpush.msra.mxu0 0.0
    %558 = vmatpush.msra.mxu0 0.0
    %559 = vmatpush.msra.mxu0 0.0
    %560 = vmatpush.msra.mxu0 %v44
    %561 = vmatpush.msra.mxu0 %v43
    %562 = vmatpush.msra.mxu0 %v42
    %563 = vmatpush.msra.mxu0 %v41
    %564 = vmatmul.f32.gmra.mxu0 %v546
    %v565 = vpop.f32.mrf.mxu0
    %v566 = vadd.f32 %v542, %v565
    %567 = vdwg.mxu0
    %v568 = vadd.f32 %v566, %v78
    %v569 = vsub.f32 0.0, %v568
    %v570 = vmul.f32 %v569, 1.442695
    %v571 = vpow.pop %v570
    %v572 = vadd.f32 %v571, 1.0
    %v573 = vrcp.pop %v572
    %v574 = vmul.f32 %v572, %v573
    %v575 = vsub.f32 1.0, %v574
    %v576 = vmul.f32 %v573, %v575
    %v577 = vadd.f32 %v573, %v576
    %vm578 = vweird.f32 %v572
    %vm579 = vweird.f32 %v573
    %vm580 = vmor %vm578, %vm579
    %v581 = vsel %vm580, %v573, %v577
    %v582 = vand.u32 2147483647, %v572
    %vm583 = vcmp.eq.f32.partialorder %v582, 8.507059e+37
    %v584 = vand.u32 %v572, 2147483648
    %v585 = vor.u32 1.1754944e-38, %v584
    %v586 = vsel %vm583, %v585, %v581
    %v587 = vmul.f32 1.0, %v586
    %v588 = vtanh.pop %v568
    %v589 = vmul.f32 %v587, %v490
    %591 = vrot.lane.b32.xlu0 %v588, 64
    %v592 = vpop.permute.xlu0 %591
    %v594 = vmul.f32 %v587, %v592
    %596 = vrot.lane.b32.xlu0 %v594, 32
    %v597 = vpop.permute.xlu0 %596
    %v599 = vadd.f32 %v589, %v597
    %v600 = vtanh.pop %v599
    %602 = vrot.lane.b32.xlu0 %v600, 64
    %v603 = vpop.permute.xlu0 %602
    %v605 = vmul.f32 %v587, %v603
    %vm606 = vcmp.gt.s32.totalorder %v51, 4
    %v607 = vsel %vm606, 1, 0
    %608 = vset.pattern.permute.xlu0 0
    %609 = vperm.xlu0 %608, %v607
    %v610 = vpop.permute.xlu0 %609
    %vm611 = vcmp.eq.s32.totalorder %v610, 1
    %v612 = vsel %vm611, %v605, %v489
    %v613 = vsel %vm611, %v599, %v490
    %v614 = vsel %vm611, %v605, 0.0
    %616 = vrot.lane.b32.xlu0 %v614, 32
    %v617 = vpop.permute.xlu0 %616
    %v618 = vsel %vm53, %v617, 0
    %620 = vmatpush.msra.mxu0 0.0
    %621 = vmatpush.msra.mxu0 0.0
    %622 = vmatpush.msra.mxu0 0.0
    %623 = vmatpush.msra.mxu0 0.0
    %624 = vmatpush.msra.mxu0 0.0
    %625 = vmatpush.msra.mxu0 0.0
    %626 = vmatpush.msra.mxu0 0.0
    %627 = vmatpush.msra.mxu0 0.0
    %628 = vmatpush.msra.mxu0 0.0
    %629 = vmatpush.msra.mxu0 0.0
    %630 = vmatpush.msra.mxu0 0.0
    %631 = vmatpush.msra.mxu0 0.0
    %632 = vmatpush.msra.mxu0 %v49
    %633 = vmatpush.msra.mxu0 %v48
    %634 = vmatpush.msra.mxu0 %v47
    %635 = vmatpush.msra.mxu0 %v46
    %636 = vmatmul.f32.gmra.mxu0 %v618
    %v637 = vpop.f32.mrf.mxu0
    %v638 = vadd.f32 %v127, %v637
    %639 = vdwg.mxu0
    %v640 = vmul.f32 %v638, 1.442695
    %v641 = vpow.pop %v640
    %s642 = scalar_lea.vmem %s6, 32
    %643 = vst.msk [vmem:[%s642] sm:$0xff] %vm156, %v641
    %vm644 = vcmp.gt.f32.partialorder %v638, 20.0
    %v645 = vmin.f32 %v638, 20.0
    %v646 = vmul.f32 %v645, 1.442695
    %v647 = vpow.pop %v646
    %v648 = vadd.f32 %v647, 1.0
    %v649 = vlog2.pop %v648
    %v650 = vmul.f32 %v649, 0.6931472
    %v651 = vmul.f32 -0.5, %v647
    %v652 = vadd.f32 %v651, 1.0
    %v653 = vmul.f32 %v652, %v647
    %v654 = vand.u32 2147483647, %v647
    %vm655 = vcmp.lt.f32.partialorder %v654, 0.0004427343
    %v656 = vsel %vm655, %v653, %v650
    %v657 = vsel %vm644, %v638, %v656
    %659 = vrot.lane.b32.xlu0 %v657, 127
    %v660 = vpop.permute.xlu0 %659
    %s662 = scalar_lea.vmem %s7, 32
    %663 = vst.msk [vmem:[%s662] sm:$0xff] %vm156, %v660
    %s664 = scalar_lea.vmem [#allocation2], 40
    %v665 = vld [vmem:[%s664] sm:$0xff]
    %667 = vrot.lane.b32.xlu0 %v612, 32
    %v668 = vpop.permute.xlu0 %667
    %v669 = vsel %vm53, %v668, 0
    %671 = vmatpush.msra.mxu0 0.0
    %672 = vmatpush.msra.mxu0 0.0
    %673 = vmatpush.msra.mxu0 0.0
    %674 = vmatpush.msra.mxu0 0.0
    %675 = vmatpush.msra.mxu0 0.0
    %676 = vmatpush.msra.mxu0 0.0
    %677 = vmatpush.msra.mxu0 0.0
    %678 = vmatpush.msra.mxu0 0.0
    %679 = vmatpush.msra.mxu0 0.0
    %680 = vmatpush.msra.mxu0 0.0
    %681 = vmatpush.msra.mxu0 0.0
    %682 = vmatpush.msra.mxu0 0.0
    %683 = vmatpush.msra.mxu0 %v44
    %684 = vmatpush.msra.mxu0 %v43
    %685 = vmatpush.msra.mxu0 %v42
    %686 = vmatpush.msra.mxu0 %v41
    %687 = vmatmul.f32.gmra.mxu0 %v669
    %v688 = vpop.f32.mrf.mxu0
    %v689 = vadd.f32 %v665, %v688
    %690 = vdwg.mxu0
    %v691 = vadd.f32 %v689, %v78
    %v692 = vsub.f32 0.0, %v691
    %v693 = vmul.f32 %v692, 1.442695
    %v694 = vpow.pop %v693
    %v695 = vadd.f32 %v694, 1.0
    %v696 = vrcp.pop %v695
    %v697 = vmul.f32 %v695, %v696
    %v698 = vsub.f32 1.0, %v697
    %v699 = vmul.f32 %v696, %v698
    %v700 = vadd.f32 %v696, %v699
    %vm701 = vweird.f32 %v695
    %vm702 = vweird.f32 %v696
    %vm703 = vmor %vm701, %vm702
    %v704 = vsel %vm703, %v696, %v700
    %v705 = vand.u32 2147483647, %v695
    %vm706 = vcmp.eq.f32.partialorder %v705, 8.507059e+37
    %v707 = vand.u32 %v695, 2147483648
    %v708 = vor.u32 1.1754944e-38, %v707
    %v709 = vsel %vm706, %v708, %v704
    %v710 = vmul.f32 1.0, %v709
    %v711 = vtanh.pop %v691
    %v712 = vmul.f32 %v710, %v613
    %714 = vrot.lane.b32.xlu0 %v711, 64
    %v715 = vpop.permute.xlu0 %714
    %v717 = vmul.f32 %v710, %v715
    %719 = vrot.lane.b32.xlu0 %v717, 32
    %v720 = vpop.permute.xlu0 %719
    %v722 = vadd.f32 %v712, %v720
    %v723 = vtanh.pop %v722
    %725 = vrot.lane.b32.xlu0 %v723, 64
    %v726 = vpop.permute.xlu0 %725
    %v728 = vmul.f32 %v710, %v726
    %vm729 = vcmp.gt.s32.totalorder %v51, 5
    %v730 = vsel %vm729, 1, 0
    %731 = vset.pattern.permute.xlu0 0
    %732 = vperm.xlu0 %731, %v730
    %v733 = vpop.permute.xlu0 %732
    %vm734 = vcmp.eq.s32.totalorder %v733, 1
    %v735 = vsel %vm734, %v728, %v612
    %v736 = vsel %vm734, %v722, %v613
    %v737 = vsel %vm734, %v728, 0.0
    %739 = vrot.lane.b32.xlu0 %v737, 32
    %v740 = vpop.permute.xlu0 %739
    %v741 = vsel %vm53, %v740, 0
    %743 = vmatpush.msra.mxu0 0.0
    %744 = vmatpush.msra.mxu0 0.0
    %745 = vmatpush.msra.mxu0 0.0
    %746 = vmatpush.msra.mxu0 0.0
    %747 = vmatpush.msra.mxu0 0.0
    %748 = vmatpush.msra.mxu0 0.0
    %749 = vmatpush.msra.mxu0 0.0
    %750 = vmatpush.msra.mxu0 0.0
    %751 = vmatpush.msra.mxu0 0.0
    %752 = vmatpush.msra.mxu0 0.0
    %753 = vmatpush.msra.mxu0 0.0
    %754 = vmatpush.msra.mxu0 0.0
    %755 = vmatpush.msra.mxu0 %v49
    %756 = vmatpush.msra.mxu0 %v48
    %757 = vmatpush.msra.mxu0 %v47
    %758 = vmatpush.msra.mxu0 %v46
    %759 = vmatmul.f32.gmra.mxu0 %v741
    %v760 = vpop.f32.mrf.mxu0
    %v761 = vadd.f32 %v127, %v760
    %762 = vdwg.mxu0
    %v763 = vmul.f32 %v761, 1.442695
    %v764 = vpow.pop %v763
    %s765 = scalar_lea.vmem %s6, 40
    %766 = vst.msk [vmem:[%s765] sm:$0xff] %vm156, %v764
    %vm767 = vcmp.gt.f32.partialorder %v761, 20.0
    %v768 = vmin.f32 %v761, 20.0
    %v769 = vmul.f32 %v768, 1.442695
    %v770 = vpow.pop %v769
    %v771 = vadd.f32 %v770, 1.0
    %v772 = vlog2.pop %v771
    %v773 = vmul.f32 %v772, 0.6931472
    %v774 = vmul.f32 -0.5, %v770
    %v775 = vadd.f32 %v774, 1.0
    %v776 = vmul.f32 %v775, %v770
    %v777 = vand.u32 2147483647, %v770
    %vm778 = vcmp.lt.f32.partialorder %v777, 0.0004427343
    %v779 = vsel %vm778, %v776, %v773
    %v780 = vsel %vm767, %v761, %v779
    %782 = vrot.lane.b32.xlu0 %v780, 127
    %v783 = vpop.permute.xlu0 %782
    %s785 = scalar_lea.vmem %s7, 40
    %786 = vst.msk [vmem:[%s785] sm:$0xff] %vm156, %v783
    %s787 = scalar_lea.vmem [#allocation2], 48
    %v788 = vld [vmem:[%s787] sm:$0xff]
    %790 = vrot.lane.b32.xlu0 %v735, 32
    %v791 = vpop.permute.xlu0 %790
    %v792 = vsel %vm53, %v791, 0
    %794 = vmatpush.msra.mxu0 0.0
    %795 = vmatpush.msra.mxu0 0.0
    %796 = vmatpush.msra.mxu0 0.0
    %797 = vmatpush.msra.mxu0 0.0
    %798 = vmatpush.msra.mxu0 0.0
    %799 = vmatpush.msra.mxu0 0.0
    %800 = vmatpush.msra.mxu0 0.0
    %801 = vmatpush.msra.mxu0 0.0
    %802 = vmatpush.msra.mxu0 0.0
    %803 = vmatpush.msra.mxu0 0.0
    %804 = vmatpush.msra.mxu0 0.0
    %805 = vmatpush.msra.mxu0 0.0
    %806 = vmatpush.msra.mxu0 %v44
    %807 = vmatpush.msra.mxu0 %v43
    %808 = vmatpush.msra.mxu0 %v42
    %809 = vmatpush.msra.mxu0 %v41
    %810 = vmatmul.f32.gmra.mxu0 %v792
    %v811 = vpop.f32.mrf.mxu0
    %v812 = vadd.f32 %v788, %v811
    %813 = vdwg.mxu0
    %v814 = vadd.f32 %v812, %v78
    %v815 = vsub.f32 0.0, %v814
    %v816 = vmul.f32 %v815, 1.442695
    %v817 = vpow.pop %v816
    %v818 = vadd.f32 %v817, 1.0
    %v819 = vrcp.pop %v818
    %v820 = vmul.f32 %v818, %v819
    %v821 = vsub.f32 1.0, %v820
    %v822 = vmul.f32 %v819, %v821
    %v823 = vadd.f32 %v819, %v822
    %vm824 = vweird.f32 %v818
    %vm825 = vweird.f32 %v819
    %vm826 = vmor %vm824, %vm825
    %v827 = vsel %vm826, %v819, %v823
    %v828 = vand.u32 2147483647, %v818
    %vm829 = vcmp.eq.f32.partialorder %v828, 8.507059e+37
    %v830 = vand.u32 %v818, 2147483648
    %v831 = vor.u32 1.1754944e-38, %v830
    %v832 = vsel %vm829, %v831, %v827
    %v833 = vmul.f32 1.0, %v832
    %v834 = vtanh.pop %v814
    %v835 = vmul.f32 %v833, %v736
    %837 = vrot.lane.b32.xlu0 %v834, 64
    %v838 = vpop.permute.xlu0 %837
    %v840 = vmul.f32 %v833, %v838
    %842 = vrot.lane.b32.xlu0 %v840, 32
    %v843 = vpop.permute.xlu0 %842
    %v845 = vadd.f32 %v835, %v843
    %v846 = vtanh.pop %v845
    %848 = vrot.lane.b32.xlu0 %v846, 64
    %v849 = vpop.permute.xlu0 %848
    %v851 = vmul.f32 %v833, %v849
    %vm852 = vcmp.gt.s32.totalorder %v51, 6
    %v853 = vsel %vm852, 1, 0
    %854 = vset.pattern.permute.xlu0 0
    %855 = vperm.xlu0 %854, %v853
    %v856 = vpop.permute.xlu0 %855
    %vm857 = vcmp.eq.s32.totalorder %v856, 1
    %v858 = vsel %vm857, %v851, %v735
    %v859 = vsel %vm857, %v845, %v736
    %v860 = vsel %vm857, %v851, 0.0
    %862 = vrot.lane.b32.xlu0 %v860, 32
    %v863 = vpop.permute.xlu0 %862
    %v864 = vsel %vm53, %v863, 0
    %866 = vmatpush.msra.mxu0 0.0
    %867 = vmatpush.msra.mxu0 0.0
    %868 = vmatpush.msra.mxu0 0.0
    %869 = vmatpush.msra.mxu0 0.0
    %870 = vmatpush.msra.mxu0 0.0
    %871 = vmatpush.msra.mxu0 0.0
    %872 = vmatpush.msra.mxu0 0.0
    %873 = vmatpush.msra.mxu0 0.0
    %874 = vmatpush.msra.mxu0 0.0
    %875 = vmatpush.msra.mxu0 0.0
    %876 = vmatpush.msra.mxu0 0.0
    %877 = vmatpush.msra.mxu0 0.0
    %878 = vmatpush.msra.mxu0 %v49
    %879 = vmatpush.msra.mxu0 %v48
    %880 = vmatpush.msra.mxu0 %v47
    %881 = vmatpush.msra.mxu0 %v46
    %882 = vmatmul.f32.gmra.mxu0 %v864
    %v883 = vpop.f32.mrf.mxu0
    %v884 = vadd.f32 %v127, %v883
    %885 = vdwg.mxu0
    %v886 = vmul.f32 %v884, 1.442695
    %v887 = vpow.pop %v886
    %s888 = scalar_lea.vmem %s6, 48
    %889 = vst.msk [vmem:[%s888] sm:$0xff] %vm156, %v887
    %vm890 = vcmp.gt.f32.partialorder %v884, 20.0
    %v891 = vmin.f32 %v884, 20.0
    %v892 = vmul.f32 %v891, 1.442695
    %v893 = vpow.pop %v892
    %v894 = vadd.f32 %v893, 1.0
    %v895 = vlog2.pop %v894
    %v896 = vmul.f32 %v895, 0.6931472
    %v897 = vmul.f32 -0.5, %v893
    %v898 = vadd.f32 %v897, 1.0
    %v899 = vmul.f32 %v898, %v893
    %v900 = vand.u32 2147483647, %v893
    %vm901 = vcmp.lt.f32.partialorder %v900, 0.0004427343
    %v902 = vsel %vm901, %v899, %v896
    %v903 = vsel %vm890, %v884, %v902
    %905 = vrot.lane.b32.xlu0 %v903, 127
    %v906 = vpop.permute.xlu0 %905
    %s908 = scalar_lea.vmem %s7, 48
    %909 = vst.msk [vmem:[%s908] sm:$0xff] %vm156, %v906
    %s910 = scalar_lea.vmem [#allocation2], 56
    %v911 = vld [vmem:[%s910] sm:$0xff]
    %913 = vrot.lane.b32.xlu0 %v858, 32
    %v914 = vpop.permute.xlu0 %913
    %v915 = vsel %vm53, %v914, 0
    %917 = vmatpush.msra.mxu0 0.0
    %918 = vmatpush.msra.mxu0 0.0
    %919 = vmatpush.msra.mxu0 0.0
    %920 = vmatpush.msra.mxu0 0.0
    %921 = vmatpush.msra.mxu0 0.0
    %922 = vmatpush.msra.mxu0 0.0
    %923 = vmatpush.msra.mxu0 0.0
    %924 = vmatpush.msra.mxu0 0.0
    %925 = vmatpush.msra.mxu0 0.0
    %926 = vmatpush.msra.mxu0 0.0
    %927 = vmatpush.msra.mxu0 0.0
    %928 = vmatpush.msra.mxu0 0.0
    %929 = vmatpush.msra.mxu0 %v44
    %930 = vmatpush.msra.mxu0 %v43
    %931 = vmatpush.msra.mxu0 %v42
    %932 = vmatpush.msra.mxu0 %v41
    %933 = vmatmul.f32.gmra.mxu0 %v915
    %v934 = vpop.f32.mrf.mxu0
    %v935 = vadd.f32 %v911, %v934
    %936 = vdwg.mxu0
    %v937 = vadd.f32 %v935, %v78
    %v938 = vsub.f32 0.0, %v937
    %v939 = vmul.f32 %v938, 1.442695
    %v940 = vpow.pop %v939
    %v941 = vadd.f32 %v940, 1.0
    %v942 = vrcp.pop %v941
    %v943 = vmul.f32 %v941, %v942
    %v944 = vsub.f32 1.0, %v943
    %v945 = vmul.f32 %v942, %v944
    %v946 = vadd.f32 %v942, %v945
    %vm947 = vweird.f32 %v941
    %vm948 = vweird.f32 %v942
    %vm949 = vmor %vm947, %vm948
    %v950 = vsel %vm949, %v942, %v946
    %v951 = vand.u32 2147483647, %v941
    %vm952 = vcmp.eq.f32.partialorder %v951, 8.507059e+37
    %v953 = vand.u32 %v941, 2147483648
    %v954 = vor.u32 1.1754944e-38, %v953
    %v955 = vsel %vm952, %v954, %v950
    %v956 = vmul.f32 1.0, %v955
    %v957 = vtanh.pop %v937
    %v958 = vmul.f32 %v956, %v859
    %960 = vrot.lane.b32.xlu0 %v957, 64
    %v961 = vpop.permute.xlu0 %960
    %v963 = vmul.f32 %v956, %v961
    %965 = vrot.lane.b32.xlu0 %v963, 32
    %v966 = vpop.permute.xlu0 %965
    %v968 = vadd.f32 %v958, %v966
    %v969 = vtanh.pop %v968
    %971 = vrot.lane.b32.xlu0 %v969, 64
    %v972 = vpop.permute.xlu0 %971
    %v974 = vmul.f32 %v956, %v972
    %vm975 = vcmp.gt.s32.totalorder %v51, 7
    %v976 = vsel %vm975, 1, 0
    %977 = vset.pattern.permute.xlu0 0
    %978 = vperm.xlu0 %977, %v976
    %v979 = vpop.permute.xlu0 %978
    %vm980 = vcmp.eq.s32.totalorder %v979, 1
    %v981 = vsel %vm980, %v974, 0.0
    %983 = vrot.lane.b32.xlu0 %v981, 32
    %v984 = vpop.permute.xlu0 %983
    %v985 = vsel %vm53, %v984, 0
    %987 = vmatpush.msra.mxu0 0.0
    %988 = vmatpush.msra.mxu0 0.0
    %989 = vmatpush.msra.mxu0 0.0
    %990 = vmatpush.msra.mxu0 0.0
    %991 = vmatpush.msra.mxu0 0.0
    %992 = vmatpush.msra.mxu0 0.0
    %993 = vmatpush.msra.mxu0 0.0
    %994 = vmatpush.msra.mxu0 0.0
    %995 = vmatpush.msra.mxu0 0.0
    %996 = vmatpush.msra.mxu0 0.0
    %997 = vmatpush.msra.mxu0 0.0
    %998 = vmatpush.msra.mxu0 0.0
    %999 = vmatpush.msra.mxu0 %v49
    %1000 = vmatpush.msra.mxu0 %v48
    %1001 = vmatpush.msra.mxu0 %v47
    %1002 = vmatpush.msra.mxu0 %v46
    %1003 = vmatmul.f32.gmra.mxu0 %v985
    %v1004 = vpop.f32.mrf.mxu0
    %v1005 = vadd.f32 %v127, %v1004
    %1006 = vdwg.mxu0
    %v1007 = vmul.f32 %v1005, 1.442695
    %v1008 = vpow.pop %v1007
    %s1009 = scalar_lea.vmem %s6, 56
    %1010 = vst.msk [vmem:[%s1009] sm:$0xff] %vm156, %v1008
    %vm1011 = vcmp.gt.f32.partialorder %v1005, 20.0
    %v1012 = vmin.f32 %v1005, 20.0
    %v1013 = vmul.f32 %v1012, 1.442695
    %v1014 = vpow.pop %v1013
    %v1015 = vadd.f32 %v1014, 1.0
    %v1016 = vlog2.pop %v1015
    %v1017 = vmul.f32 %v1016, 0.6931472
    %v1018 = vmul.f32 -0.5, %v1014
    %v1019 = vadd.f32 %v1018, 1.0
    %v1020 = vmul.f32 %v1019, %v1014
    %v1021 = vand.u32 2147483647, %v1014
    %vm1022 = vcmp.lt.f32.partialorder %v1021, 0.0004427343
    %v1023 = vsel %vm1022, %v1020, %v1017
    %v1024 = vsel %vm1011, %v1005, %v1023
    %1026 = vrot.lane.b32.xlu0 %v1024, 127
    %v1027 = vpop.permute.xlu0 %1026
    %s1029 = scalar_lea.vmem %s7, 56
    %1030 = vst.msk [vmem:[%s1029] sm:$0xff] %vm156, %v1027
    // Predicated region
    $region30: #{tpu_custom_call.1} parent=1 // pred_check
      _
    $region31: #{tpu_custom_call.1} parent=1 // pred_check_branch
      %1032 = sbr.rel (0) target = $region33
    $region32: #{tpu_custom_call.1} parent=1 // pred_region
      _
    $region33: #{tpu_custom_call.1} parent=1 // pred_fallthru
      _
    // Predicated region
    $region34: #{tpu_custom_call.1} parent=1 // pred_check
      _
    $region35: #{tpu_custom_call.1} parent=1 // pred_check_branch
      %1034 = sbr.rel (0) target = $region37
    $region36: #{tpu_custom_call.1} parent=1 // pred_region
      _
    $region37: #{tpu_custom_call.1} parent=1 // pred_fallthru
      _
    // Predicated region
    $region38: #{tpu_custom_call.1} parent=1 // pred_check
      _
    $region39: #{tpu_custom_call.1} parent=1 // pred_check_branch
      %1036 = sbr.rel (0) target = $region41
    $region40: #{tpu_custom_call.1} parent=1 // pred_region
      _
    $region41: #{tpu_custom_call.1} parent=1 // pred_fallthru
      _
    // Predicated region
    $region42: #{tpu_custom_call.1} parent=1 // pred_check
      _
    $region43: #{tpu_custom_call.1} parent=1 // pred_check_branch
      %1038 = sbr.rel (0) target = $region45
    $region44: #{tpu_custom_call.1} parent=1 // pred_region
      _
    $region45: #{tpu_custom_call.1} parent=1 // pred_fallthru
      _
    %1039 = vsyncpa [#allocation3], 1

</llo_original>
